<compile_context>
chip_gen: v6e
topology: v6e:2x2x1
jax: 0.10.0
libtpu: 0.0.40
codegen_flags: <defaults>
</compile_context>

<pallas_src>
import functools

import jax
import jax.numpy as jnp
from jax import lax
from jax.experimental import pallas as pl
from jax.experimental.pallas import tpu as pltpu

_LANE = 128      # lane width -> gate padding
_SUBLANE = 8     # f32 sublane -> batch padding
_OUT_PAD = 128   # lane-dense output slab width


def _round_up(x, m):
    return (x + m - 1) // m * m


def _estimate_vmem_bytes(Tc, BB, D, Hp, gi_itemsize):
    """Rough VMEM footprint for one grid step (lane padding included)."""
    d_pad = max(_round_up(D, _LANE), _LANE)
    x_buf = 2 * Tc * BB * d_pad * 4                 # streamed x, double buffered
    gi = Tc * BB * 3 * Hp * gi_itemsize             # pre-projected gates scratch
    h = BB * Hp * 4                                 # hidden-state scratch
    w = (D * 3 * Hp + Hp * 3 * Hp + Hp * _OUT_PAD + 4 * Hp + 2 * _OUT_PAD) * 4
    if gi_itemsize < 4:                             # in-kernel bf16 weight casts
        w += (D * 3 * Hp + Hp * 3 * Hp) * 2
    out = 2 * BB * _OUT_PAD * 4
    return x_buf + gi + h + w + out


def _choose_tiles(B, T, D, Hp, gi_itemsize, budget_bytes):
    """Pick (batch block, time chunk) under an explicit VMEM budget."""
    # 256-row batch blocks fill the 256-wide MXU on v6e/v7x; 128 otherwise.
    BB = min(_round_up(B, _SUBLANE), 256 if B >= 256 else 128)
    # Give the "parallel" batch axis >= 2 blocks so both TensorCores get work.
    if _round_up(B, BB) // BB == 1 and B > _SUBLANE:
        BB = _round_up((B + 1) // 2, _SUBLANE)

    cap = min(max(T, 1), 128)
    tc_fit = 1
    for t in range(cap, 0, -1):
        if _estimate_vmem_bytes(t, BB, D, Hp, gi_itemsize) <= budget_bytes:
            tc_fit = t
            break
    # Prefer a chunk size that divides T (no tail-mask chunk) unless it is
    # much smaller than the largest chunk that fits the budget.
    tc = tc_fit
    for t in range(tc_fit, 0, -1):
        if T % t == 0:
            if 2 * t >= tc_fit:
                tc = t
            break
    return BB, tc


def _gru_fc_kernel(x_ref, wih_ref, whh_ref, bgi_ref, bhhn_ref, wfc_ref, bfc_ref,
                   out_ref, h_ref, gi_ref, *,
                   hidden_pad, time_chunk, seq_len, has_tail, unroll,
                   compute_dtype):
    """One grid step = one (batch block, time chunk).

    x_ref   : (Tc, BB, D)      time-major input chunk (streamed)
    wih_ref : (D,  3*Hp)       input->gates weights (r|z|n), lane-aligned
    whh_ref : (Hp, 3*Hp)       hidden->gates weights
    bgi_ref : (1,  3*Hp)       b_ih (+ b_hh for r,z gates) folded together
    bhhn_ref: (1,  Hp)         b_hh for the n gate (must stay inside r*(...))
    wfc_ref : (Hp, 128)        fc weight in column 0, rest zero (lane-dense out)
    bfc_ref : (1,  128)        fc bias in column 0
    out_ref : (BB, 128)        output slab (column 0 is the real output)
    h_ref   : (BB, Hp)  f32    VMEM scratch: hidden state carried across chunks
    gi_ref  : (Tc, BB, 3*Hp)   VMEM scratch: pre-projected input gates (compute dtype)
    """
    Hp = hidden_pad
    Tc = time_chunk
    t_idx = pl.program_id(1)
    n_t = pl.num_programs(1)
    BB = h_ref.shape[0]
    D = x_ref.shape[-1]

    @pl.when(t_idx == 0)
    def _():
        h_ref[...] = jnp.zeros_like(h_ref)

    # ---- hoisted input projection: ONE (Tc*BB, D) x (D, 3Hp) matmul per chunk ----
    x_chunk = x_ref[...].reshape(Tc * BB, D).astype(compute_dtype)
    wih = wih_ref[...].astype(compute_dtype)
    gi = jnp.dot(x_chunk, wih, preferred_element_type=jnp.float32) + bgi_ref[...]
    gi_ref[...] = gi.reshape(Tc, BB, 3 * Hp).astype(gi_ref.dtype)

    whh = whh_ref[...].astype(compute_dtype)            # cast once per chunk
    # hoist the bias broadcast out of the serial loop (JAX does not CSE it)
    bhh_n = jnp.broadcast_to(bhhn_ref[...], (BB, Hp))
    t0 = t_idx * Tc

    def make_step(masked):
        def step(s, h):
            gi_s = gi_ref[s].astype(jnp.float32)                    # (BB, 3Hp)
            gh = jnp.dot(h.astype(compute_dtype), whh,
                         preferred_element_type=jnp.float32)        # (BB, 3Hp)
            # sigmoid(x) = 0.5*tanh(0.5*x) + 0.5  -> one EUP op per gate
            r = 0.5 * jnp.tanh(0.5 * (gi_s[:, 0:Hp] + gh[:, 0:Hp])) + 0.5
            z = 0.5 * jnp.tanh(0.5 * (gi_s[:, Hp:2 * Hp] + gh[:, Hp:2 * Hp])) + 0.5
            n = jnp.tanh(gi_s[:, 2 * Hp:3 * Hp] + r * (gh[:, 2 * Hp:3 * Hp] + bhh_n))
            h_new = (1.0 - z) * n + z * h
            if masked:  # only compiled into the final-chunk variant
                h_new = jnp.where(t0 + s < seq_len, h_new, h)
            return h_new
        return step

    if not has_tail:
        # T divides evenly into chunks: unmasked loop everywhere.
        h_ref[...] = lax.fori_loop(0, Tc, make_step(False), h_ref[...],
                                   unroll=unroll)
    else:
        @pl.when(t_idx < n_t - 1)
        def _():
            h_ref[...] = lax.fori_loop(0, Tc, make_step(False), h_ref[...],
                                       unroll=unroll)

        @pl.when(t_idx == n_t - 1)
        def _():
            h_ref[...] = lax.fori_loop(0, Tc, make_step(True), h_ref[...],
                                       unroll=unroll)

    @pl.when(t_idx == n_t - 1)
    def _():
        # lane-dense (BB, 128) output slab; real result lives in column 0
        out = jnp.dot(h_ref[...], wfc_ref[...],
                      preferred_element_type=jnp.float32) + bfc_ref[...]
        out_ref[...] = out.astype(out_ref.dtype)


def gru_model_forward(x, kparams, *, time_chunk=None, batch_block=None,
                      compute_dtype=jnp.bfloat16, vmem_budget_bytes=48 << 20):
    """x: (B, T, D) float32 (batch_first, like the PyTorch module). Returns (B, 1)."""
    B, T, D = x.shape
    Hp = kparams["whh"].shape[0]

    gi_dtype = compute_dtype if jnp.dtype(compute_dtype).itemsize < 4 else jnp.float32
    gi_isz = jnp.dtype(gi_dtype).itemsize

    auto_bb, auto_tc = _choose_tiles(B, T, D, Hp, gi_isz, vmem_budget_bytes)
    BB = batch_block or auto_bb
    Tc = time_chunk or auto_tc
    B_pad = _round_up(B, BB)
    T_pad = _round_up(T, Tc)
    has_tail = T_pad != T
    unroll = Tc if Tc <= 8 else 8   # partial unroll: LLO visibility w/o code blowup

    # Pad + go time-major in a single wrapper-side relayout.
    x_p = jnp.zeros((T_pad, B_pad, D), x.dtype)
    x_p = x_p.at[:T, :B, :].set(jnp.transpose(x, (1, 0, 2)))

    est = _estimate_vmem_bytes(Tc, BB, D, Hp, gi_isz)
    vmem_limit = int(min(max(2 * est, 32 << 20), 128 << 20))

    grid = (B_pad // BB, T_pad // Tc)
    kernel = functools.partial(_gru_fc_kernel, hidden_pad=Hp, time_chunk=Tc,
                               seq_len=T, has_tail=has_tail, unroll=unroll,
                               compute_dtype=compute_dtype)

    # Constant-index weights/biases: single-buffered (no point double-buffering
    # a block whose index never changes; frees VMEM for bigger Tc/BB).
    def const_spec(shape):
        return pl.BlockSpec(shape, lambda b, t: (0, 0),
                            pipeline_mode=pl.Buffered(1))

    out_p = pl.pallas_call(
        kernel,
        out_shape=jax.ShapeDtypeStruct((B_pad, _OUT_PAD), jnp.float32),
        grid_spec=pltpu.PrefetchScalarGridSpec(
            num_scalar_prefetch=0,
            grid=grid,
            in_specs=[
                pl.BlockSpec((Tc, BB, D), lambda b, t: (t, b, 0)),   # x (streamed)
                const_spec((D, 3 * Hp)),                             # wih (resident)
                const_spec((Hp, 3 * Hp)),                            # whh
                const_spec((1, 3 * Hp)),                             # b_gi
                const_spec((1, Hp)),                                 # bhh_n
                const_spec((Hp, _OUT_PAD)),                          # wfc
                const_spec((1, _OUT_PAD)),                           # bfc
            ],
            out_specs=pl.BlockSpec((BB, _OUT_PAD), lambda b, t: (b, 0)),
            scratch_shapes=[
                pltpu.VMEM((BB, Hp), jnp.float32),        # hidden-state accumulator
                pltpu.VMEM((Tc, BB, 3 * Hp), gi_dtype),   # pre-projected input gates
            ],
        ),
        compiler_params=pltpu.CompilerParams(
            dimension_semantics=("parallel", "arbitrary"),
            vmem_limit_bytes=vmem_limit),
    )(x_p, kparams["wih"], kparams["whh"], kparams["b_gi"],
      kparams["bhh_n"], kparams["wfc"], kparams["bfc"])

    return out_p[:B, 0:1]


def init_params(key, input_dim, hidden_dim):
    """PyTorch-layout parameters: nn.GRU (gate order r|z|n) + nn.Linear."""
    k = jax.random.split(key, 6)
    H, D = hidden_dim, input_dim
    s = 1.0 / float(H) ** 0.5
    return {
        "w_ih": jax.random.uniform(k[0], (3 * H, D), jnp.float32, -s, s),
        "w_hh": jax.random.uniform(k[1], (3 * H, H), jnp.float32, -s, s),
        "b_ih": jax.random.uniform(k[2], (3 * H,), jnp.float32, -s, s),
        "b_hh": jax.random.uniform(k[3], (3 * H,), jnp.float32, -s, s),
        "w_fc": jax.random.uniform(k[4], (1, H), jnp.float32, -s, s),
        "b_fc": jax.random.uniform(k[5], (1,), jnp.float32, -s, s),
    }


def prepare_kernel_params(raw, input_dim, hidden_dim):
    """Pre-transpose, lane-pad each gate to 128, and fold/hoist biases.

    Zero padding is exact: padded hidden units have r=z=0.5, n=0, so starting
    from h=0 they stay 0 forever and contribute nothing through zero fc rows.
    """
    H, D = hidden_dim, input_dim
    Hp = _round_up(H, _LANE)

    wih_p = jnp.zeros((D, 3 * Hp), jnp.float32)
    whh_p = jnp.zeros((Hp, 3 * Hp), jnp.float32)
    b_gi = jnp.zeros((1, 3 * Hp), jnp.float32)
    bhh_n = jnp.zeros((1, Hp), jnp.float32)
    for g in range(3):  # gate order r | z | n
        wih_p = wih_p.at[:, g * Hp:g * Hp + H].set(raw["w_ih"][g * H:(g + 1) * H].T)
        whh_p = whh_p.at[:H, g * Hp:g * Hp + H].set(raw["w_hh"][g * H:(g + 1) * H].T)
        bi = raw["b_ih"][g * H:(g + 1) * H]
        bh = raw["b_hh"][g * H:(g + 1) * H]
        if g < 2:  # r, z: both biases can be folded into the input projection
            b_gi = b_gi.at[0, g * Hp:g * Hp + H].set(bi + bh)
        else:      # n: b_hh_n must stay inside r * (h @ W_hn + b_hn)
            b_gi = b_gi.at[0, g * Hp:g * Hp + H].set(bi)
            bhh_n = bhh_n.at[0, :H].set(bh)

    wfc_p = jnp.zeros((Hp, _OUT_PAD), jnp.float32).at[:H, 0].set(raw["w_fc"][0])
    bfc_p = jnp.zeros((1, _OUT_PAD), jnp.float32).at[0, 0].set(raw["b_fc"][0])
    return {"wih": wih_p, "whh": whh_p, "b_gi": b_gi, "bhh_n": bhh_n,
            "wfc": wfc_p, "bfc": bfc_p}


def _reference(x, raw, hidden_dim):
    """Pure-JAX reference on the raw PyTorch-layout params (sanity check)."""
    H = hidden_dim
    B, T, _ = x.shape
    h = jnp.zeros((B, H), jnp.float32)
    for t in range(T):
        gi = x[:, t, :] @ raw["w_ih"].T + raw["b_ih"]
        gh = h @ raw["w_hh"].T + raw["b_hh"]
        r = jax.nn.sigmoid(gi[:, :H] + gh[:, :H])
        z = jax.nn.sigmoid(gi[:, H:2 * H] + gh[:, H:2 * H])
        n = jnp.tanh(gi[:, 2 * H:] + r * gh[:, 2 * H:])
        h = (1.0 - z) * n + z * h
    return h @ raw["w_fc"].T + raw["b_fc"]


if __name__ == "__main__":
    B, T, D, H = 2, 8, 16, 64   # module default hidden_dim=64

    key = jax.random.PRNGKey(0)
    kx, kp = jax.random.split(key)
    x = jax.random.normal(kx, (B, T, D), jnp.float32)
    raw = init_params(kp, input_dim=D, hidden_dim=H)
    kparams = prepare_kernel_params(raw, input_dim=D, hidden_dim=H)
    ref = _reference(x, raw, H)

    # 1) exact-parity path: f32 MXU operands, time_chunk=3 exercises the
    #    multi-chunk h carry AND the masked final-tail chunk.
    out_f32 = jax.block_until_ready(
        gru_model_forward(x, kparams, time_chunk=3, compute_dtype=jnp.float32))
    assert out_f32.shape == (B, 1)
    assert jnp.allclose(out_f32, ref, atol=1e-5, rtol=1e-5), (out_f32, ref)

    # 2) default fast path: bf16 MXU operands / bf16 gi scratch, auto tiles
    #    (Tc divides T -> unmasked loop), looser tolerance for bf16 rounding.
    out_bf16 = jax.block_until_ready(gru_model_forward(x, kparams))
    assert out_bf16.shape == (B, 1)
    assert jnp.allclose(out_bf16, ref, atol=5e-2, rtol=5e-2), (out_bf16, ref)

    print("KERNEL_OK")
</pallas_src>

<mosaic_0001>
module attributes {stable_mosaic.version = 11 : i64} {
  func.func @_gru_fc_kernel(%arg0: i32, %arg1: i32, %arg2: memref<3x8x16xf32, #tpu.memory_space<vmem>>, %arg3: memref<16x384xf32, #tpu.memory_space<vmem>>, %arg4: memref<128x384xf32, #tpu.memory_space<vmem>>, %arg5: memref<1x384xf32, #tpu.memory_space<vmem>>, %arg6: memref<1x128xf32, #tpu.memory_space<vmem>>, %arg7: memref<128x128xf32, #tpu.memory_space<vmem>>, %arg8: memref<1x128xf32, #tpu.memory_space<vmem>>, %arg9: memref<8x128xf32, #tpu.memory_space<vmem>>, %arg10: memref<8x128xf32, #tpu.memory_space<vmem>>, %arg11: memref<3x8x384xf32, #tpu.memory_space<vmem>>) attributes {dimension_semantics = [#tpu.dimension_semantics<parallel>, #tpu.dimension_semantics<arbitrary>], iteration_bounds = array<i64: 1, 3>, scalar_prefetch = 0 : i64, scratch_operands = 2 : i64, tpu.core_type = #tpu.core_type<tc>, window_params = [{transform_indices = @transform_0, window_bounds = array<i64: 3, 8, 16>}, {pipeline_mode = #tpu.pipeline_mode<synchronous>, transform_indices = @transform_1, window_bounds = array<i64: 16, 384>}, {pipeline_mode = #tpu.pipeline_mode<synchronous>, transform_indices = @transform_2, window_bounds = array<i64: 128, 384>}, {pipeline_mode = #tpu.pipeline_mode<synchronous>, transform_indices = @transform_3, window_bounds = array<i64: 1, 384>}, {pipeline_mode = #tpu.pipeline_mode<synchronous>, transform_indices = @transform_4, window_bounds = array<i64: 1, 128>}, {pipeline_mode = #tpu.pipeline_mode<synchronous>, transform_indices = @transform_5, window_bounds = array<i64: 128, 128>}, {pipeline_mode = #tpu.pipeline_mode<synchronous>, transform_indices = @transform_6, window_bounds = array<i64: 1, 128>}, {transform_indices = @transform_7, window_bounds = array<i64: 8, 128>}]} {
    %c0_i32 = arith.constant 0 : i32
    %0 = arith.cmpi eq, %arg1, %c0_i32 : i32
    %1 = arith.extui %0 : i1 to i32
    %c0_i32_0 = arith.constant 0 : i32
    %2 = arith.cmpi ne, %1, %c0_i32_0 : i32
    scf.if %2 {
      %cst_19 = arith.constant 0.000000e+00 : f32
      %26 = vector.broadcast %cst_19 : f32 to vector<8x128xf32>
      %c0_20 = arith.constant 0 : index
      %c0_21 = arith.constant 0 : index
      %27 = vector.load %arg10[%c0_20, %c0_21] : memref<8x128xf32, #tpu.memory_space<vmem>>, vector<8x128xf32>
      tpu.vector_store %arg10[%c0_20, %c0_21], %26 {strides = array<i32>} : memref<8x128xf32, #tpu.memory_space<vmem>>, vector<8x128xf32>,
    } else {
    }
    %c0 = arith.constant 0 : index
    %c0_1 = arith.constant 0 : index
    %c0_2 = arith.constant 0 : index
    %3 = vector.load %arg2[%c0, %c0_1, %c0_2] : memref<3x8x16xf32, #tpu.memory_space<vmem>>, vector<3x8x16xf32>
    %4 = vector.shape_cast %3 : vector<3x8x16xf32> to vector<24x16xf32>
    %c0_3 = arith.constant 0 : index
    %c0_4 = arith.constant 0 : index
    %5 = vector.load %arg3[%c0_3, %c0_4] : memref<16x384xf32, #tpu.memory_space<vmem>>, vector<16x384xf32>
    %cst = arith.constant dense<0.000000e+00> : vector<24x384xf32>
    %6 = tpu.matmul %4, %5, %cst {dimension_numbers = #tpu.dot_dimension_numbers<[1], [0], [0], [1], [0, 0, 1, 1], [], []>} : vector<24x16xf32>, vector<16x384xf32>, vector<24x384xf32> -> vector<24x384xf32>
    %c0_5 = arith.constant 0 : index
    %c0_6 = arith.constant 0 : index
    %7 = vector.load %arg5[%c0_5, %c0_6] : memref<1x384xf32, #tpu.memory_space<vmem>>, vector<1x384xf32>
    %8 = vector.broadcast %7 : vector<1x384xf32> to vector<24x384xf32>
    %9 = arith.addf %6, %8 : vector<24x384xf32>
    %10 = vector.shape_cast %9 : vector<24x384xf32> to vector<3x8x384xf32>
    %c0_7 = arith.constant 0 : index
    %c0_8 = arith.constant 0 : index
    %c0_9 = arith.constant 0 : index
    %11 = vector.load %arg11[%c0_7, %c0_8, %c0_9] : memref<3x8x384xf32, #tpu.memory_space<vmem>>, vector<3x8x384xf32>
    tpu.vector_store %arg11[%c0_7, %c0_8, %c0_9], %10 {strides = array<i32>} : memref<3x8x384xf32, #tpu.memory_space<vmem>>, vector<3x8x384xf32>,
    %c0_10 = arith.constant 0 : index
    %c0_11 = arith.constant 0 : index
    %12 = vector.load %arg4[%c0_10, %c0_11] : memref<128x384xf32, #tpu.memory_space<vmem>>, vector<128x384xf32>
    %c0_12 = arith.constant 0 : index
    %c0_13 = arith.constant 0 : index
    %13 = vector.load %arg6[%c0_12, %c0_13] : memref<1x128xf32, #tpu.memory_space<vmem>>, vector<1x128xf32>
    %14 = vector.shape_cast %13 : vector<1x128xf32> to vector<1x128xf32>
    %15 = vector.broadcast %14 : vector<1x128xf32> to vector<8x128xf32>
    %c3_i32 = arith.constant 3 : i32
    %16 = arith.muli %arg1, %c3_i32 : i32
    %c2_i32 = arith.constant 2 : i32
    %17 = arith.cmpi slt, %arg1, %c2_i32 : i32
    %18 = arith.extui %17 : i1 to i32
    %c0_i32_14 = arith.constant 0 : i32
    %19 = arith.cmpi ne, %18, %c0_i32_14 : i32
    scf.if %19 {
      %c0_19 = arith.constant 0 : index
      %c0_20 = arith.constant 0 : index
      %26 = vector.load %arg10[%c0_19, %c0_20] : memref<8x128xf32, #tpu.memory_space<vmem>>, vector<8x128xf32>
      %c0_i32_21 = arith.constant 0 : i32
      %27 = arith.index_cast %c0_i32_21 : i32 to index
      %c0_22 = arith.constant 0 : index
      %c0_23 = arith.constant 0 : index
      %28 = vector.load %arg11[%27, %c0_22, %c0_23] : memref<3x8x384xf32, #tpu.memory_space<vmem>>, vector<1x8x384xf32>
      %29 = vector.shape_cast %28 : vector<1x8x384xf32> to vector<8x384xf32>
      %cst_24 = arith.constant dense<0.000000e+00> : vector<8x384xf32>
      %30 = tpu.matmul %26, %12, %cst_24 {dimension_numbers = #tpu.dot_dimension_numbers<[1], [0], [0], [1], [0, 0, 1, 1], [], []>} : vector<8x128xf32>, vector<128x384xf32>, vector<8x384xf32> -> vector<8x384xf32>
      %31 = vector.extract_strided_slice %29 {offsets = [0, 0], sizes = [8, 128], strides = [1, 1]} : vector<8x384xf32> to vector<8x128xf32>
      %32 = vector.extract_strided_slice %30 {offsets = [0, 0], sizes = [8, 128], strides = [1, 1]} : vector<8x384xf32> to vector<8x128xf32>
      %33 = arith.addf %31, %32 : vector<8x128xf32>
      %cst_25 = arith.constant 5.000000e-01 : f32
      %34 = vector.broadcast %cst_25 : f32 to vector<8x128xf32>
      %35 = arith.mulf %34, %33 : vector<8x128xf32>
      %36 = math.tanh %35 : vector<8x128xf32>
      %cst_26 = arith.constant 5.000000e-01 : f32
      %37 = vector.broadcast %cst_26 : f32 to vector<8x128xf32>
      %38 = arith.mulf %37, %36 : vector<8x128xf32>
      %cst_27 = arith.constant 5.000000e-01 : f32
      %39 = vector.broadcast %cst_27 : f32 to vector<8x128xf32>
      %40 = arith.addf %38, %39 : vector<8x128xf32>
      %41 = vector.extract_strided_slice %29 {offsets = [0, 128], sizes = [8, 128], strides = [1, 1]} : vector<8x384xf32> to vector<8x128xf32>
      %42 = vector.extract_strided_slice %30 {offsets = [0, 128], sizes = [8, 128], strides = [1, 1]} : vector<8x384xf32> to vector<8x128xf32>
      %43 = arith.addf %41, %42 : vector<8x128xf32>
      %cst_28 = arith.constant 5.000000e-01 : f32
      %44 = vector.broadcast %cst_28 : f32 to vector<8x128xf32>
      %45 = arith.mulf %44, %43 : vector<8x128xf32>
      %46 = math.tanh %45 : vector<8x128xf32>
      %cst_29 = arith.constant 5.000000e-01 : f32
      %47 = vector.broadcast %cst_29 : f32 to vector<8x128xf32>
      %48 = arith.mulf %47, %46 : vector<8x128xf32>
      %cst_30 = arith.constant 5.000000e-01 : f32
      %49 = vector.broadcast %cst_30 : f32 to vector<8x128xf32>
      %50 = arith.addf %48, %49 : vector<8x128xf32>
      %51 = vector.extract_strided_slice %29 {offsets = [0, 256], sizes = [8, 128], strides = [1, 1]} : vector<8x384xf32> to vector<8x128xf32>
      %52 = vector.extract_strided_slice %30 {offsets = [0, 256], sizes = [8, 128], strides = [1, 1]} : vector<8x384xf32> to vector<8x128xf32>
      %53 = arith.addf %52, %15 : vector<8x128xf32>
      %54 = arith.mulf %40, %53 : vector<8x128xf32>
      %55 = arith.addf %51, %54 : vector<8x128xf32>
      %56 = math.tanh %55 : vector<8x128xf32>
      %cst_31 = arith.constant 1.000000e+00 : f32
      %57 = vector.broadcast %cst_31 : f32 to vector<8x128xf32>
      %58 = arith.subf %57, %50 : vector<8x128xf32>
      %59 = arith.mulf %58, %56 : vector<8x128xf32>
      %60 = arith.mulf %50, %26 : vector<8x128xf32>
      %61 = arith.addf %59, %60 : vector<8x128xf32>
      %c1_i32 = arith.constant 1 : i32
      %62 = arith.index_cast %c1_i32 : i32 to index
      %c0_32 = arith.constant 0 : index
      %c0_33 = arith.constant 0 : index
      %63 = vector.load %arg11[%62, %c0_32, %c0_33] : memref<3x8x384xf32, #tpu.memory_space<vmem>>, vector<1x8x384xf32>
      %64 = vector.shape_cast %63 : vector<1x8x384xf32> to vector<8x384xf32>
      %cst_34 = arith.constant dense<0.000000e+00> : vector<8x384xf32>
      %65 = tpu.matmul %61, %12, %cst_34 {dimension_numbers = #tpu.dot_dimension_numbers<[1], [0], [0], [1], [0, 0, 1, 1], [], []>} : vector<8x128xf32>, vector<128x384xf32>, vector<8x384xf32> -> vector<8x384xf32>
      %66 = vector.extract_strided_slice %64 {offsets = [0, 0], sizes = [8, 128], strides = [1, 1]} : vector<8x384xf32> to vector<8x128xf32>
      %67 = vector.extract_strided_slice %65 {offsets = [0, 0], sizes = [8, 128], strides = [1, 1]} : vector<8x384xf32> to vector<8x128xf32>
      %68 = arith.addf %66, %67 : vector<8x128xf32>
      %cst_35 = arith.constant 5.000000e-01 : f32
      %69 = vector.broadcast %cst_35 : f32 to vector<8x128xf32>
      %70 = arith.mulf %69, %68 : vector<8x128xf32>
      %71 = math.tanh %70 : vector<8x128xf32>
      %cst_36 = arith.constant 5.000000e-01 : f32
      %72 = vector.broadcast %cst_36 : f32 to vector<8x128xf32>
      %73 = arith.mulf %72, %71 : vector<8x128xf32>
      %cst_37 = arith.constant 5.000000e-01 : f32
      %74 = vector.broadcast %cst_37 : f32 to vector<8x128xf32>
      %75 = arith.addf %73, %74 : vector<8x128xf32>
      %76 = vector.extract_strided_slice %64 {offsets = [0, 128], sizes = [8, 128], strides = [1, 1]} : vector<8x384xf32> to vector<8x128xf32>
      %77 = vector.extract_strided_slice %65 {offsets = [0, 128], sizes = [8, 128], strides = [1, 1]} : vector<8x384xf32> to vector<8x128xf32>
      %78 = arith.addf %76, %77 : vector<8x128xf32>
      %cst_38 = arith.constant 5.000000e-01 : f32
      %79 = vector.broadcast %cst_38 : f32 to vector<8x128xf32>
      %80 = arith.mulf %79, %78 : vector<8x128xf32>
      %81 = math.tanh %80 : vector<8x128xf32>
      %cst_39 = arith.constant 5.000000e-01 : f32
      %82 = vector.broadcast %cst_39 : f32 to vector<8x128xf32>
      %83 = arith.mulf %82, %81 : vector<8x128xf32>
      %cst_40 = arith.constant 5.000000e-01 : f32
      %84 = vector.broadcast %cst_40 : f32 to vector<8x128xf32>
      %85 = arith.addf %83, %84 : vector<8x128xf32>
      %86 = vector.extract_strided_slice %64 {offsets = [0, 256], sizes = [8, 128], strides = [1, 1]} : vector<8x384xf32> to vector<8x128xf32>
      %87 = vector.extract_strided_slice %65 {offsets = [0, 256], sizes = [8, 128], strides = [1, 1]} : vector<8x384xf32> to vector<8x128xf32>
      %88 = arith.addf %87, %15 : vector<8x128xf32>
      %89 = arith.mulf %75, %88 : vector<8x128xf32>
      %90 = arith.addf %86, %89 : vector<8x128xf32>
      %91 = math.tanh %90 : vector<8x128xf32>
      %cst_41 = arith.constant 1.000000e+00 : f32
      %92 = vector.broadcast %cst_41 : f32 to vector<8x128xf32>
      %93 = arith.subf %92, %85 : vector<8x128xf32>
      %94 = arith.mulf %93, %91 : vector<8x128xf32>
      %95 = arith.mulf %85, %61 : vector<8x128xf32>
      %96 = arith.addf %94, %95 : vector<8x128xf32>
      %c2_i32_42 = arith.constant 2 : i32
      %97 = arith.index_cast %c2_i32_42 : i32 to index
      %c0_43 = arith.constant 0 : index
      %c0_44 = arith.constant 0 : index
      %98 = vector.load %arg11[%97, %c0_43, %c0_44] : memref<3x8x384xf32, #tpu.memory_space<vmem>>, vector<1x8x384xf32>
      %99 = vector.shape_cast %98 : vector<1x8x384xf32> to vector<8x384xf32>
      %cst_45 = arith.constant dense<0.000000e+00> : vector<8x384xf32>
      %100 = tpu.matmul %96, %12, %cst_45 {dimension_numbers = #tpu.dot_dimension_numbers<[1], [0], [0], [1], [0, 0, 1, 1], [], []>} : vector<8x128xf32>, vector<128x384xf32>, vector<8x384xf32> -> vector<8x384xf32>
      %101 = vector.extract_strided_slice %99 {offsets = [0, 0], sizes = [8, 128], strides = [1, 1]} : vector<8x384xf32> to vector<8x128xf32>
      %102 = vector.extract_strided_slice %100 {offsets = [0, 0], sizes = [8, 128], strides = [1, 1]} : vector<8x384xf32> to vector<8x128xf32>
      %103 = arith.addf %101, %102 : vector<8x128xf32>
      %cst_46 = arith.constant 5.000000e-01 : f32
      %104 = vector.broadcast %cst_46 : f32 to vector<8x128xf32>
      %105 = arith.mulf %104, %103 : vector<8x128xf32>
      %106 = math.tanh %105 : vector<8x128xf32>
      %cst_47 = arith.constant 5.000000e-01 : f32
      %107 = vector.broadcast %cst_47 : f32 to vector<8x128xf32>
      %108 = arith.mulf %107, %106 : vector<8x128xf32>
      %cst_48 = arith.constant 5.000000e-01 : f32
      %109 = vector.broadcast %cst_48 : f32 to vector<8x128xf32>
      %110 = arith.addf %108, %109 : vector<8x128xf32>
      %111 = vector.extract_strided_slice %99 {offsets = [0, 128], sizes = [8, 128], strides = [1, 1]} : vector<8x384xf32> to vector<8x128xf32>
      %112 = vector.extract_strided_slice %100 {offsets = [0, 128], sizes = [8, 128], strides = [1, 1]} : vector<8x384xf32> to vector<8x128xf32>
      %113 = arith.addf %111, %112 : vector<8x128xf32>
      %cst_49 = arith.constant 5.000000e-01 : f32
      %114 = vector.broadcast %cst_49 : f32 to vector<8x128xf32>
      %115 = arith.mulf %114, %113 : vector<8x128xf32>
      %116 = math.tanh %115 : vector<8x128xf32>
      %cst_50 = arith.constant 5.000000e-01 : f32
      %117 = vector.broadcast %cst_50 : f32 to vector<8x128xf32>
      %118 = arith.mulf %117, %116 : vector<8x128xf32>
      %cst_51 = arith.constant 5.000000e-01 : f32
      %119 = vector.broadcast %cst_51 : f32 to vector<8x128xf32>
      %120 = arith.addf %118, %119 : vector<8x128xf32>
      %121 = vector.extract_strided_slice %99 {offsets = [0, 256], sizes = [8, 128], strides = [1, 1]} : vector<8x384xf32> to vector<8x128xf32>
      %122 = vector.extract_strided_slice %100 {offsets = [0, 256], sizes = [8, 128], strides = [1, 1]} : vector<8x384xf32> to vector<8x128xf32>
      %123 = arith.addf %122, %15 : vector<8x128xf32>
      %124 = arith.mulf %110, %123 : vector<8x128xf32>
      %125 = arith.addf %121, %124 : vector<8x128xf32>
      %126 = math.tanh %125 : vector<8x128xf32>
      %cst_52 = arith.constant 1.000000e+00 : f32
      %127 = vector.broadcast %cst_52 : f32 to vector<8x128xf32>
      %128 = arith.subf %127, %120 : vector<8x128xf32>
      %129 = arith.mulf %128, %126 : vector<8x128xf32>
      %130 = arith.mulf %120, %96 : vector<8x128xf32>
      %131 = arith.addf %129, %130 : vector<8x128xf32>
      %c3_i32_53 = arith.constant 3 : i32
      %c0_54 = arith.constant 0 : index
      %c0_55 = arith.constant 0 : index
      %132 = vector.load %arg10[%c0_54, %c0_55] : memref<8x128xf32, #tpu.memory_space<vmem>>, vector<8x128xf32>
      tpu.vector_store %arg10[%c0_54, %c0_55], %131 {strides = array<i32>} : memref<8x128xf32, #tpu.memory_space<vmem>>, vector<8x128xf32>,
    } else {
    }
    %c2_i32_15 = arith.constant 2 : i32
    %20 = arith.cmpi eq, %arg1, %c2_i32_15 : i32
    %21 = arith.extui %20 : i1 to i32
    %c0_i32_16 = arith.constant 0 : i32
    %22 = arith.cmpi ne, %21, %c0_i32_16 : i32
    scf.if %22 {
      %c0_19 = arith.constant 0 : index
      %c0_20 = arith.constant 0 : index
      %26 = vector.load %arg10[%c0_19, %c0_20] : memref<8x128xf32, #tpu.memory_space<vmem>>, vector<8x128xf32>
      %c0_i32_21 = arith.constant 0 : i32
      %27 = arith.index_cast %c0_i32_21 : i32 to index
      %c0_22 = arith.constant 0 : index
      %c0_23 = arith.constant 0 : index
      %28 = vector.load %arg11[%27, %c0_22, %c0_23] : memref<3x8x384xf32, #tpu.memory_space<vmem>>, vector<1x8x384xf32>
      %29 = vector.shape_cast %28 : vector<1x8x384xf32> to vector<8x384xf32>
      %cst_24 = arith.constant dense<0.000000e+00> : vector<8x384xf32>
      %30 = tpu.matmul %26, %12, %cst_24 {dimension_numbers = #tpu.dot_dimension_numbers<[1], [0], [0], [1], [0, 0, 1, 1], [], []>} : vector<8x128xf32>, vector<128x384xf32>, vector<8x384xf32> -> vector<8x384xf32>
      %31 = vector.extract_strided_slice %29 {offsets = [0, 0], sizes = [8, 128], strides = [1, 1]} : vector<8x384xf32> to vector<8x128xf32>
      %32 = vector.extract_strided_slice %30 {offsets = [0, 0], sizes = [8, 128], strides = [1, 1]} : vector<8x384xf32> to vector<8x128xf32>
      %33 = arith.addf %31, %32 : vector<8x128xf32>
      %cst_25 = arith.constant 5.000000e-01 : f32
      %34 = vector.broadcast %cst_25 : f32 to vector<8x128xf32>
      %35 = arith.mulf %34, %33 : vector<8x128xf32>
      %36 = math.tanh %35 : vector<8x128xf32>
      %cst_26 = arith.constant 5.000000e-01 : f32
      %37 = vector.broadcast %cst_26 : f32 to vector<8x128xf32>
      %38 = arith.mulf %37, %36 : vector<8x128xf32>
      %cst_27 = arith.constant 5.000000e-01 : f32
      %39 = vector.broadcast %cst_27 : f32 to vector<8x128xf32>
      %40 = arith.addf %38, %39 : vector<8x128xf32>
      %41 = vector.extract_strided_slice %29 {offsets = [0, 128], sizes = [8, 128], strides = [1, 1]} : vector<8x384xf32> to vector<8x128xf32>
      %42 = vector.extract_strided_slice %30 {offsets = [0, 128], sizes = [8, 128], strides = [1, 1]} : vector<8x384xf32> to vector<8x128xf32>
      %43 = arith.addf %41, %42 : vector<8x128xf32>
      %cst_28 = arith.constant 5.000000e-01 : f32
      %44 = vector.broadcast %cst_28 : f32 to vector<8x128xf32>
      %45 = arith.mulf %44, %43 : vector<8x128xf32>
      %46 = math.tanh %45 : vector<8x128xf32>
      %cst_29 = arith.constant 5.000000e-01 : f32
      %47 = vector.broadcast %cst_29 : f32 to vector<8x128xf32>
      %48 = arith.mulf %47, %46 : vector<8x128xf32>
      %cst_30 = arith.constant 5.000000e-01 : f32
      %49 = vector.broadcast %cst_30 : f32 to vector<8x128xf32>
      %50 = arith.addf %48, %49 : vector<8x128xf32>
      %51 = vector.extract_strided_slice %29 {offsets = [0, 256], sizes = [8, 128], strides = [1, 1]} : vector<8x384xf32> to vector<8x128xf32>
      %52 = vector.extract_strided_slice %30 {offsets = [0, 256], sizes = [8, 128], strides = [1, 1]} : vector<8x384xf32> to vector<8x128xf32>
      %53 = arith.addf %52, %15 : vector<8x128xf32>
      %54 = arith.mulf %40, %53 : vector<8x128xf32>
      %55 = arith.addf %51, %54 : vector<8x128xf32>
      %56 = math.tanh %55 : vector<8x128xf32>
      %cst_31 = arith.constant 1.000000e+00 : f32
      %57 = vector.broadcast %cst_31 : f32 to vector<8x128xf32>
      %58 = arith.subf %57, %50 : vector<8x128xf32>
      %59 = arith.mulf %58, %56 : vector<8x128xf32>
      %60 = arith.mulf %50, %26 : vector<8x128xf32>
      %61 = arith.addf %59, %60 : vector<8x128xf32>
      %62 = arith.addi %16, %c0_i32_21 : i32
      %c8_i32 = arith.constant 8 : i32
      %63 = arith.cmpi slt, %62, %c8_i32 : i32
      %64 = arith.select %63, %61, %26 : vector<8x128xf32>
      %c1_i32 = arith.constant 1 : i32
      %65 = arith.index_cast %c1_i32 : i32 to index
      %c0_32 = arith.constant 0 : index
      %c0_33 = arith.constant 0 : index
      %66 = vector.load %arg11[%65, %c0_32, %c0_33] : memref<3x8x384xf32, #tpu.memory_space<vmem>>, vector<1x8x384xf32>
      %67 = vector.shape_cast %66 : vector<1x8x384xf32> to vector<8x384xf32>
      %cst_34 = arith.constant dense<0.000000e+00> : vector<8x384xf32>
      %68 = tpu.matmul %64, %12, %cst_34 {dimension_numbers = #tpu.dot_dimension_numbers<[1], [0], [0], [1], [0, 0, 1, 1], [], []>} : vector<8x128xf32>, vector<128x384xf32>, vector<8x384xf32> -> vector<8x384xf32>
      %69 = vector.extract_strided_slice %67 {offsets = [0, 0], sizes = [8, 128], strides = [1, 1]} : vector<8x384xf32> to vector<8x128xf32>
      %70 = vector.extract_strided_slice %68 {offsets = [0, 0], sizes = [8, 128], strides = [1, 1]} : vector<8x384xf32> to vector<8x128xf32>
      %71 = arith.addf %69, %70 : vector<8x128xf32>
      %cst_35 = arith.constant 5.000000e-01 : f32
      %72 = vector.broadcast %cst_35 : f32 to vector<8x128xf32>
      %73 = arith.mulf %72, %71 : vector<8x128xf32>
      %74 = math.tanh %73 : vector<8x128xf32>
      %cst_36 = arith.constant 5.000000e-01 : f32
      %75 = vector.broadcast %cst_36 : f32 to vector<8x128xf32>
      %76 = arith.mulf %75, %74 : vector<8x128xf32>
      %cst_37 = arith.constant 5.000000e-01 : f32
      %77 = vector.broadcast %cst_37 : f32 to vector<8x128xf32>
      %78 = arith.addf %76, %77 : vector<8x128xf32>
      %79 = vector.extract_strided_slice %67 {offsets = [0, 128], sizes = [8, 128], strides = [1, 1]} : vector<8x384xf32> to vector<8x128xf32>
      %80 = vector.extract_strided_slice %68 {offsets = [0, 128], sizes = [8, 128], strides = [1, 1]} : vector<8x384xf32> to vector<8x128xf32>
      %81 = arith.addf %79, %80 : vector<8x128xf32>
      %cst_38 = arith.constant 5.000000e-01 : f32
      %82 = vector.broadcast %cst_38 : f32 to vector<8x128xf32>
      %83 = arith.mulf %82, %81 : vector<8x128xf32>
      %84 = math.tanh %83 : vector<8x128xf32>
      %cst_39 = arith.constant 5.000000e-01 : f32
      %85 = vector.broadcast %cst_39 : f32 to vector<8x128xf32>
      %86 = arith.mulf %85, %84 : vector<8x128xf32>
      %cst_40 = arith.constant 5.000000e-01 : f32
      %87 = vector.broadcast %cst_40 : f32 to vector<8x128xf32>
      %88 = arith.addf %86, %87 : vector<8x128xf32>
      %89 = vector.extract_strided_slice %67 {offsets = [0, 256], sizes = [8, 128], strides = [1, 1]} : vector<8x384xf32> to vector<8x128xf32>
      %90 = vector.extract_strided_slice %68 {offsets = [0, 256], sizes = [8, 128], strides = [1, 1]} : vector<8x384xf32> to vector<8x128xf32>
      %91 = arith.addf %90, %15 : vector<8x128xf32>
      %92 = arith.mulf %78, %91 : vector<8x128xf32>
      %93 = arith.addf %89, %92 : vector<8x128xf32>
      %94 = math.tanh %93 : vector<8x128xf32>
      %cst_41 = arith.constant 1.000000e+00 : f32
      %95 = vector.broadcast %cst_41 : f32 to vector<8x128xf32>
      %96 = arith.subf %95, %88 : vector<8x128xf32>
      %97 = arith.mulf %96, %94 : vector<8x128xf32>
      %98 = arith.mulf %88, %64 : vector<8x128xf32>
      %99 = arith.addf %97, %98 : vector<8x128xf32>
      %100 = arith.addi %16, %c1_i32 : i32
      %c8_i32_42 = arith.constant 8 : i32
      %101 = arith.cmpi slt, %100, %c8_i32_42 : i32
      %102 = arith.select %101, %99, %64 : vector<8x128xf32>
      %c2_i32_43 = arith.constant 2 : i32
      %103 = arith.index_cast %c2_i32_43 : i32 to index
      %c0_44 = arith.constant 0 : index
      %c0_45 = arith.constant 0 : index
      %104 = vector.load %arg11[%103, %c0_44, %c0_45] : memref<3x8x384xf32, #tpu.memory_space<vmem>>, vector<1x8x384xf32>
      %105 = vector.shape_cast %104 : vector<1x8x384xf32> to vector<8x384xf32>
      %cst_46 = arith.constant dense<0.000000e+00> : vector<8x384xf32>
      %106 = tpu.matmul %102, %12, %cst_46 {dimension_numbers = #tpu.dot_dimension_numbers<[1], [0], [0], [1], [0, 0, 1, 1], [], []>} : vector<8x128xf32>, vector<128x384xf32>, vector<8x384xf32> -> vector<8x384xf32>
      %107 = vector.extract_strided_slice %105 {offsets = [0, 0], sizes = [8, 128], strides = [1, 1]} : vector<8x384xf32> to vector<8x128xf32>
      %108 = vector.extract_strided_slice %106 {offsets = [0, 0], sizes = [8, 128], strides = [1, 1]} : vector<8x384xf32> to vector<8x128xf32>
      %109 = arith.addf %107, %108 : vector<8x128xf32>
      %cst_47 = arith.constant 5.000000e-01 : f32
      %110 = vector.broadcast %cst_47 : f32 to vector<8x128xf32>
      %111 = arith.mulf %110, %109 : vector<8x128xf32>
      %112 = math.tanh %111 : vector<8x128xf32>
      %cst_48 = arith.constant 5.000000e-01 : f32
      %113 = vector.broadcast %cst_48 : f32 to vector<8x128xf32>
      %114 = arith.mulf %113, %112 : vector<8x128xf32>
      %cst_49 = arith.constant 5.000000e-01 : f32
      %115 = vector.broadcast %cst_49 : f32 to vector<8x128xf32>
      %116 = arith.addf %114, %115 : vector<8x128xf32>
      %117 = vector.extract_strided_slice %105 {offsets = [0, 128], sizes = [8, 128], strides = [1, 1]} : vector<8x384xf32> to vector<8x128xf32>
      %118 = vector.extract_strided_slice %106 {offsets = [0, 128], sizes = [8, 128], strides = [1, 1]} : vector<8x384xf32> to vector<8x128xf32>
      %119 = arith.addf %117, %118 : vector<8x128xf32>
      %cst_50 = arith.constant 5.000000e-01 : f32
      %120 = vector.broadcast %cst_50 : f32 to vector<8x128xf32>
      %121 = arith.mulf %120, %119 : vector<8x128xf32>
      %122 = math.tanh %121 : vector<8x128xf32>
      %cst_51 = arith.constant 5.000000e-01 : f32
      %123 = vector.broadcast %cst_51 : f32 to vector<8x128xf32>
      %124 = arith.mulf %123, %122 : vector<8x128xf32>
      %cst_52 = arith.constant 5.000000e-01 : f32
      %125 = vector.broadcast %cst_52 : f32 to vector<8x128xf32>
      %126 = arith.addf %124, %125 : vector<8x128xf32>
      %127 = vector.extract_strided_slice %105 {offsets = [0, 256], sizes = [8, 128], strides = [1, 1]} : vector<8x384xf32> to vector<8x128xf32>
      %128 = vector.extract_strided_slice %106 {offsets = [0, 256], sizes = [8, 128], strides = [1, 1]} : vector<8x384xf32> to vector<8x128xf32>
      %129 = arith.addf %128, %15 : vector<8x128xf32>
      %130 = arith.mulf %116, %129 : vector<8x128xf32>
      %131 = arith.addf %127, %130 : vector<8x128xf32>
      %132 = math.tanh %131 : vector<8x128xf32>
      %cst_53 = arith.constant 1.000000e+00 : f32
      %133 = vector.broadcast %cst_53 : f32 to vector<8x128xf32>
      %134 = arith.subf %133, %126 : vector<8x128xf32>
      %135 = arith.mulf %134, %132 : vector<8x128xf32>
      %136 = arith.mulf %126, %102 : vector<8x128xf32>
      %137 = arith.addf %135, %136 : vector<8x128xf32>
      %138 = arith.addi %16, %c2_i32_43 : i32
      %c8_i32_54 = arith.constant 8 : i32
      %139 = arith.cmpi slt, %138, %c8_i32_54 : i32
      %140 = arith.select %139, %137, %102 : vector<8x128xf32>
      %c3_i32_55 = arith.constant 3 : i32
      %c0_56 = arith.constant 0 : index
      %c0_57 = arith.constant 0 : index
      %141 = vector.load %arg10[%c0_56, %c0_57] : memref<8x128xf32, #tpu.memory_space<vmem>>, vector<8x128xf32>
      tpu.vector_store %arg10[%c0_56, %c0_57], %140 {strides = array<i32>} : memref<8x128xf32, #tpu.memory_space<vmem>>, vector<8x128xf32>,
    } else {
    }
    %c2_i32_17 = arith.constant 2 : i32
    %23 = arith.cmpi eq, %arg1, %c2_i32_17 : i32
    %24 = arith.extui %23 : i1 to i32
    %c0_i32_18 = arith.constant 0 : i32
    %25 = arith.cmpi ne, %24, %c0_i32_18 : i32
    scf.if %25 {
      %c0_19 = arith.constant 0 : index
      %c0_20 = arith.constant 0 : index
      %26 = vector.load %arg10[%c0_19, %c0_20] : memref<8x128xf32, #tpu.memory_space<vmem>>, vector<8x128xf32>
      %c0_21 = arith.constant 0 : index
      %c0_22 = arith.constant 0 : index
      %27 = vector.load %arg7[%c0_21, %c0_22] : memref<128x128xf32, #tpu.memory_space<vmem>>, vector<128x128xf32>
      %cst_23 = arith.constant dense<0.000000e+00> : vector<8x128xf32>
      %28 = tpu.matmul %26, %27, %cst_23 {dimension_numbers = #tpu.dot_dimension_numbers<[1], [0], [0], [1], [0, 0, 1, 1], [], []>} : vector<8x128xf32>, vector<128x128xf32>, vector<8x128xf32> -> vector<8x128xf32>
      %c0_24 = arith.constant 0 : index
      %c0_25 = arith.constant 0 : index
      %29 = vector.load %arg8[%c0_24, %c0_25] : memref<1x128xf32, #tpu.memory_space<vmem>>, vector<1x128xf32>
      %30 = vector.broadcast %29 : vector<1x128xf32> to vector<8x128xf32>
      %31 = arith.addf %28, %30 : vector<8x128xf32>
      %c0_26 = arith.constant 0 : index
      %c0_27 = arith.constant 0 : index
      %32 = vector.load %arg9[%c0_26, %c0_27] : memref<8x128xf32, #tpu.memory_space<vmem>>, vector<8x128xf32>
      tpu.vector_store %arg9[%c0_26, %c0_27], %31 {strides = array<i32>} : memref<8x128xf32, #tpu.memory_space<vmem>>, vector<8x128xf32>,
    } else {
    }
    return
  }
  func.func @transform_0(%arg0: i32, %arg1: i32) -> (i32, i32, i32) {
    %c0_i32 = arith.constant 0 : i32
    %c0_i32_0 = arith.constant 0 : i32
    return %arg1, %arg0, %c0_i32 : i32, i32, i32
  }
  func.func @transform_1(%arg0: i32, %arg1: i32) -> (i32, i32) {
    %c0_i32 = arith.constant 0 : i32
    %c0_i32_0 = arith.constant 0 : i32
    %c0_i32_1 = arith.constant 0 : i32
    return %c0_i32, %c0_i32_0 : i32, i32
  }
  func.func @transform_2(%arg0: i32, %arg1: i32) -> (i32, i32) {
    %c0_i32 = arith.constant 0 : i32
    %c0_i32_0 = arith.constant 0 : i32
    %c0_i32_1 = arith.constant 0 : i32
    return %c0_i32, %c0_i32_0 : i32, i32
  }
  func.func @transform_3(%arg0: i32, %arg1: i32) -> (i32, i32) {
    %c0_i32 = arith.constant 0 : i32
    %c0_i32_0 = arith.constant 0 : i32
    %c0_i32_1 = arith.constant 0 : i32
    return %c0_i32, %c0_i32_0 : i32, i32
  }
  func.func @transform_4(%arg0: i32, %arg1: i32) -> (i32, i32) {
    %c0_i32 = arith.constant 0 : i32
    %c0_i32_0 = arith.constant 0 : i32
    %c0_i32_1 = arith.constant 0 : i32
    return %c0_i32, %c0_i32_0 : i32, i32
  }
  func.func @transform_5(%arg0: i32, %arg1: i32) -> (i32, i32) {
    %c0_i32 = arith.constant 0 : i32
    %c0_i32_0 = arith.constant 0 : i32
    %c0_i32_1 = arith.constant 0 : i32
    return %c0_i32, %c0_i32_0 : i32, i32
  }
  func.func @transform_6(%arg0: i32, %arg1: i32) -> (i32, i32) {
    %c0_i32 = arith.constant 0 : i32
    %c0_i32_0 = arith.constant 0 : i32
    %c0_i32_1 = arith.constant 0 : i32
    return %c0_i32, %c0_i32_0 : i32, i32
  }
  func.func @transform_7(%arg0: i32, %arg1: i32) -> (i32, i32) {
    %c0_i32 = arith.constant 0 : i32
    %c0_i32_0 = arith.constant 0 : i32
    return %arg0, %c0_i32 : i32, i32
  }
}

</mosaic_0001>

<llo_original>
// kernel: tpu_custom_call.1
$region0: #{tpu_custom_call.1}
  #allocation0 [shape = 'u32[]', space=smem, size = 0x4, offset = 0x4, fixed_abs, tag = 'smem constant byte address 0x4 - core index']
  #allocation1 [shape = 'u32[144,128]{1,0:T(1,128)}', space=vmem, size = 0x12000, scoped, tag = 'internal scratch']
  #allocation2 [shape = 'f32[8,128]{1,0:T(8,128)}', space=vmem, size = 0x1000, scoped, tag = 'scratch operand']
  #allocation3 [shape = 'f32[3,8,384]{2,1,0:T(8,128)}', space=vmem, size = 0x9000, scoped, tag = 'scratch operand']
  %s0 = inlined_call_operand.hbm [shape: f32[9,8,16], index: 0, kind: input, shape index: {}]
  %s1 = inlined_call_operand.hbm [shape: f32[16,384], index: 1, kind: input, shape index: {}]
  %s2 = inlined_call_operand.hbm [shape: f32[128,384], index: 2, kind: input, shape index: {}]
  %s3 = inlined_call_operand.vmem [shape: f32[1,384], index: 3, kind: input, shape index: {}]
  %s4 = inlined_call_operand.vmem [shape: f32[1,128], index: 4, kind: input, shape index: {}]
  %s5 = inlined_call_operand.hbm [shape: f32[128,128], index: 5, kind: input, shape index: {}]
  %s6 = inlined_call_operand.vmem [shape: f32[1,128], index: 6, kind: input, shape index: {}]
  %s7 = inlined_call_operand.hbm [shape: f32[8,128], index: 7, kind: output, shape index: {}]
  %s8 = sld [smem:[#allocation0]]
  $region89: #{tpu_custom_call.1} parent=0
    _
  %s10 = ssub.s32 1, %s8
  %s11 = scalar_select 0, %s10, %s8
  $region1: #{tpu_custom_call.1} parent=0
    #allocation4 [shape = 'u8[24576]{0}', space=vmem, size = 0x6000, scoped, tag = 'input window, operand 0']
    #allocation5 [shape = 's32[2]{0}', space=sflag, size = 0x8, scoped, tag = 'scoped memory for tpu_custom_call.1']
    #allocation6 [shape = 's32[2]{0}', space=sflag, size = 0x8, scoped, tag = 'scoped memory for tpu_custom_call.1']
    #allocation7 [shape = 'u8[24576]{0}', space=vmem, size = 0x6000, scoped, tag = 'input window, operand 1, single buffered']
    #allocation8 [shape = 's32[1]{0}', space=sflag, size = 0x4, scoped, tag = 'scoped memory for tpu_custom_call.1']
    #allocation9 [shape = 'u8[196608]{0}', space=vmem, size = 0x30000, scoped, tag = 'input window, operand 2, single buffered']
    #allocation10 [shape = 'u8[65536]{0}', space=vmem, size = 0x10000, scoped, tag = 'input window, operand 5, single buffered']
    #allocation11 [shape = 's32[1]{0}', space=sflag, size = 0x4, scoped, tag = 'scoped memory for tpu_custom_call.1']
    #allocation12 [shape = 'u8[4096]{0}', space=vmem, size = 0x1000, scoped, tag = 'output window, operand 0, single buffered']
    %12 = vsyncpa [#allocation5], 0
    %s13 = scalar_lea.sflag [#allocation5], 1
    %14 = vsyncpa %s13, 0
    %15 = vsyncpa [#allocation8], 0
    %16 = vsyncpa [#allocation11], 0
    %17 = vsyncpa [#allocation6], 0
    loop: start=0, step=1, limit=5
    $region2: #{tpu_custom_call.1} parent=1 // loop_pre_header
      _
    $region3: #{tpu_custom_call.1} parent=1 // loop_header
      %s19 = sphi 0, %s23
      %p20 = scmp.ge.s32.totalorder %s19, 5
      %s26 = sphi 0, %s38
      %s27 = sphi 0, %s34
      %s28 = sphi 0, %s26
      %s29 = sphi 0, %s27
      %s30 = sphi 0, %s28
      %s31 = sphi 0, %s29
      %s43 = sphi 0, %s45
      %s46 = sphi 0, %s43
      %s47 = sphi 0, %s46
      %s63 = sphi 0, %s47
      %s67 = sphi 0, %s67
      %s69 = sphi 0, %s67
      %s70 = sphi 0, %s69
      %s84 = sphi 0, %s70
      %s88 = sphi 0, %s88
      %s90 = sphi 0, %s88
      %s91 = sphi 0, %s90
      %s105 = sphi 0, %s91
      %s109 = sphi 0, %s109
      %s111 = sphi 0, %s109
      %s112 = sphi 0, %s111
      %s126 = sphi 0, %s112
      %s130 = sphi 0, %s130
      %s132 = sphi 0, %s130
      %s133 = sphi 0, %s132
      %s147 = sphi 0, %s133
      %s151 = sphi 0, %s151
      %s153 = sphi 0, %s151
      %s154 = sphi 0, %s153
      %s168 = sphi 0, %s154
      %s172 = sphi 0, %s172
      %s174 = sphi 0, %s172
      %s175 = sphi 0, %s174
      %s189 = sphi 0, %s175
      %s195 = sphi 0, %s197
      %s198 = sphi 0, %s195
      %s199 = sphi 0, %s198
      %s215 = sphi 0, %s199
    $region4: #{tpu_custom_call.1} parent=1 // loop_header_branch
      %22 = sbr.rel (%p20) target = $region8
    $region5: #{tpu_custom_call.1} parent=1 // loop_body
      %s24 = ssub.s32 %s19, 1
      %s25 = ssub.s32 %s19, 2
      %s32 = sadd.s32 1, %s27
      %p33 = scmp.ge.s32.totalorder %s32, 3
      %s34 = scalar_select %p33, 0, %s32
      %s35 = sadd.s32 1, %s26
      %s36 = scalar_select %p33, %s35, %s26
      %p37 = scmp.ge.s32.totalorder %s36, 1
      %s38 = scalar_select %p37, 0, %s36
      %s39 = ssub.s32 %s27, %s34
      %s40 = ssub.s32 %s26, %s38
      %s41 = sor.u32 %s39, %s40
      %p42 = scmp.eq.s32.totalorder %s41, 0
      %s44 = sadd.s32 %s43, 1
      %s45 = scalar_select %p42, %s43, %s44
      %p48 = pneg %p42
      %p49 = scmp.eq.s32.totalorder %s19, 2
      %p50 = por %p48, %p49
      %p51 = scmp.ne.s32.totalorder %s43, %s46
      %p52 = scmp.eq.s32.totalorder %s19, 0
      %p53 = por %p51, %p52
      %p54 = scmp.ne.s32.totalorder %s43, %s46
      %p55 = scmp.eq.s32.totalorder %s24, 2
      %p56 = por %p54, %p55
      %p57 = scmp.ne.s32.totalorder %s46, %s47
      %p58 = scmp.eq.s32.totalorder %s24, 0
      %p59 = por %p57, %p58
      %p60 = scmp.ne.s32.totalorder %s46, %s47
      %p61 = scmp.eq.s32.totalorder %s25, 2
      %p62 = por %p60, %p61
      %p64 = scmp.ne.s32.totalorder %s47, %s63
      %p65 = scmp.eq.s32.totalorder %s25, 0
      %p66 = por %p64, %p65
      %s68 = sadd.s32 %s67, 1
      %p71 = scmp.eq.s32.totalorder %s19, 2
      %p72 = scmp.ne.s32.totalorder %s67, %s69
      %p73 = scmp.eq.s32.totalorder %s19, 0
      %p74 = por %p72, %p73
      %p75 = scmp.ne.s32.totalorder %s67, %s69
      %p76 = scmp.eq.s32.totalorder %s24, 2
      %p77 = por %p75, %p76
      %p78 = scmp.ne.s32.totalorder %s69, %s70
      %p79 = scmp.eq.s32.totalorder %s24, 0
      %p80 = por %p78, %p79
      %p81 = scmp.ne.s32.totalorder %s69, %s70
      %p82 = scmp.eq.s32.totalorder %s25, 2
      %p83 = por %p81, %p82
      %p85 = scmp.ne.s32.totalorder %s70, %s84
      %p86 = scmp.eq.s32.totalorder %s25, 0
      %p87 = por %p85, %p86
      %s89 = sadd.s32 %s88, 1
      %p92 = scmp.eq.s32.totalorder %s19, 2
      %p93 = scmp.ne.s32.totalorder %s88, %s90
      %p94 = scmp.eq.s32.totalorder %s19, 0
      %p95 = por %p93, %p94
      %p96 = scmp.ne.s32.totalorder %s88, %s90
      %p97 = scmp.eq.s32.totalorder %s24, 2
      %p98 = por %p96, %p97
      %p99 = scmp.ne.s32.totalorder %s90, %s91
      %p100 = scmp.eq.s32.totalorder %s24, 0
      %p101 = por %p99, %p100
      %p102 = scmp.ne.s32.totalorder %s90, %s91
      %p103 = scmp.eq.s32.totalorder %s25, 2
      %p104 = por %p102, %p103
      %p106 = scmp.ne.s32.totalorder %s91, %s105
      %p107 = scmp.eq.s32.totalorder %s25, 0
      %p108 = por %p106, %p107
      %s110 = sadd.s32 %s109, 1
      %p113 = scmp.eq.s32.totalorder %s19, 2
      %p114 = scmp.ne.s32.totalorder %s109, %s111
      %p115 = scmp.eq.s32.totalorder %s19, 0
      %p116 = por %p114, %p115
      %p117 = scmp.ne.s32.totalorder %s109, %s111
      %p118 = scmp.eq.s32.totalorder %s24, 2
      %p119 = por %p117, %p118
      %p120 = scmp.ne.s32.totalorder %s111, %s112
      %p121 = scmp.eq.s32.totalorder %s24, 0
      %p122 = por %p120, %p121
      %p123 = scmp.ne.s32.totalorder %s111, %s112
      %p124 = scmp.eq.s32.totalorder %s25, 2
      %p125 = por %p123, %p124
      %p127 = scmp.ne.s32.totalorder %s112, %s126
      %p128 = scmp.eq.s32.totalorder %s25, 0
      %p129 = por %p127, %p128
      %s131 = sadd.s32 %s130, 1
      %p134 = scmp.eq.s32.totalorder %s19, 2
      %p135 = scmp.ne.s32.totalorder %s130, %s132
      %p136 = scmp.eq.s32.totalorder %s19, 0
      %p137 = por %p135, %p136
      %p138 = scmp.ne.s32.totalorder %s130, %s132
      %p139 = scmp.eq.s32.totalorder %s24, 2
      %p140 = por %p138, %p139
      %p141 = scmp.ne.s32.totalorder %s132, %s133
      %p142 = scmp.eq.s32.totalorder %s24, 0
      %p143 = por %p141, %p142
      %p144 = scmp.ne.s32.totalorder %s132, %s133
      %p145 = scmp.eq.s32.totalorder %s25, 2
      %p146 = por %p144, %p145
      %p148 = scmp.ne.s32.totalorder %s133, %s147
      %p149 = scmp.eq.s32.totalorder %s25, 0
      %p150 = por %p148, %p149
      %s152 = sadd.s32 %s151, 1
      %p155 = scmp.eq.s32.totalorder %s19, 2
      %p156 = scmp.ne.s32.totalorder %s151, %s153
      %p157 = scmp.eq.s32.totalorder %s19, 0
      %p158 = por %p156, %p157
      %p159 = scmp.ne.s32.totalorder %s151, %s153
      %p160 = scmp.eq.s32.totalorder %s24, 2
      %p161 = por %p159, %p160
      %p162 = scmp.ne.s32.totalorder %s153, %s154
      %p163 = scmp.eq.s32.totalorder %s24, 0
      %p164 = por %p162, %p163
      %p165 = scmp.ne.s32.totalorder %s153, %s154
      %p166 = scmp.eq.s32.totalorder %s25, 2
      %p167 = por %p165, %p166
      %p169 = scmp.ne.s32.totalorder %s154, %s168
      %p170 = scmp.eq.s32.totalorder %s25, 0
      %p171 = por %p169, %p170
      %s173 = sadd.s32 %s172, 1
      %p176 = scmp.eq.s32.totalorder %s19, 2
      %p177 = scmp.ne.s32.totalorder %s172, %s174
      %p178 = scmp.eq.s32.totalorder %s19, 0
      %p179 = por %p177, %p178
      %p180 = scmp.ne.s32.totalorder %s172, %s174
      %p181 = scmp.eq.s32.totalorder %s24, 2
      %p182 = por %p180, %p181
      %p183 = scmp.ne.s32.totalorder %s174, %s175
      %p184 = scmp.eq.s32.totalorder %s24, 0
      %p185 = por %p183, %p184
      %p186 = scmp.ne.s32.totalorder %s174, %s175
      %p187 = scmp.eq.s32.totalorder %s25, 2
      %p188 = por %p186, %p187
      %p190 = scmp.ne.s32.totalorder %s175, %s189
      %p191 = scmp.eq.s32.totalorder %s25, 0
      %p192 = por %p190, %p191
      %s193 = ssub.s32 %s26, %s38
      %p194 = scmp.eq.s32.totalorder %s193, 0
      %s196 = sadd.s32 %s195, 1
      %s197 = scalar_select %p194, %s195, %s196
      %p200 = pneg %p194
      %p201 = scmp.eq.s32.totalorder %s19, 2
      %p202 = por %p200, %p201
      %p203 = scmp.ne.s32.totalorder %s195, %s198
      %p204 = scmp.eq.s32.totalorder %s19, 0
      %p205 = por %p203, %p204
      %p206 = scmp.ne.s32.totalorder %s195, %s198
      %p207 = scmp.eq.s32.totalorder %s24, 2
      %p208 = por %p206, %p207
      %p209 = scmp.ne.s32.totalorder %s198, %s199
      %p210 = scmp.eq.s32.totalorder %s24, 0
      %p211 = por %p209, %p210
      %p212 = scmp.ne.s32.totalorder %s198, %s199
      %p213 = scmp.eq.s32.totalorder %s25, 2
      %p214 = por %p212, %p213
      %p216 = scmp.ne.s32.totalorder %s199, %s215
      %p217 = scmp.eq.s32.totalorder %s25, 0
      %p218 = por %p216, %p217
      %p219 = scmp.le.s32.totalorder 1, %s19
      %p220 = scmp.lt.s32.totalorder %s19, 4
      %p221 = pnand %p219, %p220
      %p222 = pneg %p221
      // Predicated region
      $region9: #{tpu_custom_call.1} parent=5 // pred_check
        _
      $region10: #{tpu_custom_call.1} parent=5 // pred_check_branch
        %224 = sbr.rel (%p221) target = $region12
      $region11: #{tpu_custom_call.1} parent=5 // pred_region
        %s225 = ssub.s32 %s19, 1
        // Predicated region
        $region13: #{tpu_custom_call.1} parent=11 // pred_check
          %p226 = pneg %p80
        $region14: #{tpu_custom_call.1} parent=11 // pred_check_branch
          %228 = sbr.rel (%p226) target = $region16
        $region15: #{tpu_custom_call.1} parent=11 // pred_region
          %s230 = ssub.s32 768, 768
          %231 = vsyncadd [#allocation8], %s230
          %s232 = sshll.u32 [#allocation7], 4
          %s233 = int_to_ptr.vmem [resolvable:$true] %s232
          %238 = dma.hbm_to_vmem [thread:$0]  %s1, 768, %s233, [#allocation8], 384, 384, 24
        $region16: #{tpu_custom_call.1} parent=11 // pred_fallthru
          _
        // Predicated region
        $region17: #{tpu_custom_call.1} parent=11 // pred_check
          %p239 = pneg %p101
        $region18: #{tpu_custom_call.1} parent=11 // pred_check_branch
          %241 = sbr.rel (%p239) target = $region20
        $region19: #{tpu_custom_call.1} parent=11 // pred_region
          %s243 = ssub.s32 6144, 6144
          %244 = vsyncadd [#allocation8], %s243
          %s245 = sshll.u32 [#allocation9], 4
          %s246 = int_to_ptr.vmem [resolvable:$true] %s245
          %251 = dma.hbm_to_vmem [thread:$0]  %s2, 6144, %s246, [#allocation8], 384, 384, 24
        $region20: #{tpu_custom_call.1} parent=11 // pred_fallthru
          _
        // Predicated region
        $region21: #{tpu_custom_call.1} parent=11 // pred_check
          %p252 = pneg %p122
        $region22: #{tpu_custom_call.1} parent=11 // pred_check_branch
          %254 = sbr.rel (%p252) target = $region24
        $region23: #{tpu_custom_call.1} parent=11 // pred_region
          _
        $region24: #{tpu_custom_call.1} parent=11 // pred_fallthru
          _
        // Predicated region
        $region25: #{tpu_custom_call.1} parent=11 // pred_check
          %p255 = pneg %p143
        $region26: #{tpu_custom_call.1} parent=11 // pred_check_branch
          %257 = sbr.rel (%p255) target = $region28
        $region27: #{tpu_custom_call.1} parent=11 // pred_region
          _
        $region28: #{tpu_custom_call.1} parent=11 // pred_fallthru
          _
        // Predicated region
        $region29: #{tpu_custom_call.1} parent=11 // pred_check
          %p258 = pneg %p164
        $region30: #{tpu_custom_call.1} parent=11 // pred_check_branch
          %260 = sbr.rel (%p258) target = $region32
        $region31: #{tpu_custom_call.1} parent=11 // pred_region
          %s262 = ssub.s32 2048, 2048
          %263 = vsyncadd [#allocation11], %s262
          %s264 = sshll.u32 [#allocation10], 4
          %s265 = int_to_ptr.vmem [resolvable:$true] %s264
          %270 = dma.hbm_to_vmem [thread:$0]  %s5, 2048, %s265, [#allocation11], 128, 128, 8
        $region32: #{tpu_custom_call.1} parent=11 // pred_fallthru
          _
        // Predicated region
        $region33: #{tpu_custom_call.1} parent=11 // pred_check
          %p271 = pneg %p185
        $region34: #{tpu_custom_call.1} parent=11 // pred_check_branch
          %273 = sbr.rel (%p271) target = $region36
        $region35: #{tpu_custom_call.1} parent=11 // pred_region
          _
        $region36: #{tpu_custom_call.1} parent=11 // pred_fallthru
          _
      $region12: #{tpu_custom_call.1} parent=5 // pred_fallthru
        _
      %p274 = scmp.lt.s32.totalorder %s19, 3
      // Predicated region
      $region37: #{tpu_custom_call.1} parent=5 // pred_check
        %p275 = pneg %p274
      $region38: #{tpu_custom_call.1} parent=5 // pred_check_branch
        %277 = sbr.rel (%p275) target = $region40
      $region39: #{tpu_custom_call.1} parent=5 // pred_region
        // Predicated region
        $region41: #{tpu_custom_call.1} parent=39 // pred_check
          %p278 = pneg %p53
        $region42: #{tpu_custom_call.1} parent=39 // pred_check_branch
          %280 = sbr.rel (%p278) target = $region44
        $region43: #{tpu_custom_call.1} parent=39 // pred_region
          %s281 = sand.u32 %s43, 1
          %s282 = scalar_lea.sflag [#allocation5], %s281
          %s283 = sand.u32 %s43, 1
          %s284 = smul.addr %s283, 24
          %s285 = scalar_lea.vmem [#allocation4], %s284
          %s286 = smul.u32 3, %s27
          %s288 = ssub.s32 384, 384
          %289 = vsyncadd %s282, %s288
          %s290 = sadd.s32 %s26, %s286
          %s291 = smul.addr %s290, 128
          %s292 = scalar_lea.hbm %s0, %s291
          %s293 = sshll.u32 %s285, 4
          %s294 = int_to_ptr.vmem [resolvable:$true] %s293
          %299 = dma.hbm_to_vmem [thread:$0]  %s292, 384, %s294, %s282, 128, 128, 8
        $region44: #{tpu_custom_call.1} parent=39 // pred_fallthru
          _
      $region40: #{tpu_custom_call.1} parent=5 // pred_fallthru
        _
      %p300 = scmp.le.s32.totalorder 1, %s19
      %p301 = scmp.lt.s32.totalorder %s19, 4
      %p302 = pnand %p300, %p301
      %p303 = pneg %p302
      // Predicated region
      $region45: #{tpu_custom_call.1} parent=5 // pred_check
        _
      $region46: #{tpu_custom_call.1} parent=5 // pred_check_branch
        %305 = sbr.rel (%p302) target = $region48
      $region47: #{tpu_custom_call.1} parent=5 // pred_region
        %s306 = ssub.s32 %s19, 1
        %s307 = sand.u32 %s46, 1
        %s308 = scalar_lea.sflag [#allocation5], %s307
        %s309 = sand.u32 %s46, 1
        %s310 = smul.addr %s309, 24
        %s311 = scalar_lea.vmem [#allocation4], %s310
        // Predicated region
        $region49: #{tpu_custom_call.1} parent=47 // pred_check
          %p312 = pneg %p59
        $region50: #{tpu_custom_call.1} parent=47 // pred_check_branch
          %314 = sbr.rel (%p312) target = $region52
        $region51: #{tpu_custom_call.1} parent=47 // pred_region
          %315 = dma.done %s308, 384
        $region52: #{tpu_custom_call.1} parent=47 // pred_fallthru
          _
        // Predicated region
        $region53: #{tpu_custom_call.1} parent=47 // pred_check
          %p316 = pneg %p80
        $region54: #{tpu_custom_call.1} parent=47 // pred_check_branch
          %318 = sbr.rel (%p316) target = $region56
        $region55: #{tpu_custom_call.1} parent=47 // pred_region
          %319 = dma.done [#allocation8], 768
        $region56: #{tpu_custom_call.1} parent=47 // pred_fallthru
          _
        // Predicated region
        $region57: #{tpu_custom_call.1} parent=47 // pred_check
          %p320 = pneg %p101
        $region58: #{tpu_custom_call.1} parent=47 // pred_check_branch
          %322 = sbr.rel (%p320) target = $region60
        $region59: #{tpu_custom_call.1} parent=47 // pred_region
          %323 = dma.done [#allocation8], 6144
        $region60: #{tpu_custom_call.1} parent=47 // pred_fallthru
          _
        // Predicated region
        $region61: #{tpu_custom_call.1} parent=47 // pred_check
          %p324 = pneg %p164
        $region62: #{tpu_custom_call.1} parent=47 // pred_check_branch
          %326 = sbr.rel (%p324) target = $region64
        $region63: #{tpu_custom_call.1} parent=47 // pred_region
          %327 = dma.done [#allocation11], 2048
        $region64: #{tpu_custom_call.1} parent=47 // pred_fallthru
          _
        %s328 = sand.u32 %s46, 1
        %s329 = scalar_lea.sflag [#allocation5], %s328
        %s330 = sand.u32 %s46, 1
        %s331 = smul.addr %s330, 24
        %s332 = scalar_lea.vmem [#allocation4], %s331
        %p333 = pneg %p59
        %p334 = pneg %p56
        %p335 = pneg %p80
        %p336 = pneg %p77
        %p337 = pneg %p101
        %p338 = pneg %p98
        %p339 = pneg %p122
        %p340 = pneg %p119
        %p341 = pneg %p143
        %p342 = pneg %p140
        %p343 = pneg %p164
        %p344 = pneg %p161
        %p345 = pneg %p185
        %p346 = pneg %p182
        %p347 = pneg %p211
        %p348 = pneg %p208
        %s349 = smul.u32 3, %s29
        %p350 = scmp.eq.s32.totalorder %s29, 0
        // Predicated region
        $region65: #{tpu_custom_call.1} parent=47 // pred_check
          %p351 = pneg %p350
        $region66: #{tpu_custom_call.1} parent=47 // pred_check_branch
          %353 = sbr.rel (%p351) target = $region68
        $region67: #{tpu_custom_call.1} parent=47 // pred_region
          %354 = vst [vmem:[#allocation2] sm:$0xff] 0.0
        $region68: #{tpu_custom_call.1} parent=47 // pred_fallthru
          _
        %v355 = vld [vmem:[%s311] sm:$0xff]
        %v356 = vld [vmem:[%s311 + $0x8] sm:$0xff]
        %v357 = vld [vmem:[%s311 + $0x10] sm:$0xff]
        %v358 = vld [vmem:[#allocation7] sm:$0xff]
        %v359 = vld [vmem:[#allocation7 + $0x8] sm:$0xff]
        %v360 = vld [vmem:[#allocation7 + $0x10] sm:$0xff]
        %v361 = vld [vmem:[#allocation7 + $0x18] sm:$0xff]
        %v362 = vld [vmem:[#allocation7 + $0x20] sm:$0xff]
        %v363 = vld [vmem:[#allocation7 + $0x28] sm:$0xff]
        %v364 = vld [vmem:[%s3] sm:$0x7]
        %v366 = vlaneseq
        %v367 = vshrl.u32 %v366, 7
        %v368 = vsub.s32 0, %v367
        %v369 = vrot.slane %v364, %v368
        %v370 = vlaneseq
        %v371 = vshrl.u32 %v370, 7
        %v372 = vsub.s32 1, %v371
        %v373 = vrot.slane %v364, %v372
        %v374 = vlaneseq
        %v375 = vshrl.u32 %v374, 7
        %v376 = vsub.s32 2, %v375
        %v377 = vrot.slane %v364, %v376
        %vm381 = vcmask 130048
        %v383 = vsel %vm381, %v355, 0
        %v386 = vsel %vm381, %v356, 0
        %v389 = vsel %vm381, %v357, 0
        %391 = vmatprep.subr.mxu0 0.0
        %392 = vmatpush1.msra.mxu0 0.0
        %393 = vmatprep.subr.mxu0 0.0
        %394 = vmatpush1.msra.mxu0 0.0
        %395 = vmatprep.subr.mxu0 0.0
        %396 = vmatpush1.msra.mxu0 0.0
        %397 = vmatprep.subr.mxu0 0.0
        %398 = vmatpush1.msra.mxu0 0.0
        %399 = vmatprep.subr.mxu0 0.0
        %400 = vmatpush1.msra.mxu0 0.0
        %401 = vmatprep.subr.mxu0 0.0
        %402 = vmatpush1.msra.mxu0 0.0
        %403 = vmatprep.subr.mxu0 0.0
        %404 = vmatpush1.msra.mxu0 0.0
        %405 = vmatprep.subr.mxu0 0.0
        %406 = vmatpush1.msra.mxu0 0.0
        %407 = vmatprep.subr.mxu0 0.0
        %408 = vmatpush1.msra.mxu0 0.0
        %409 = vmatprep.subr.mxu0 0.0
        %410 = vmatpush1.msra.mxu0 0.0
        %411 = vmatprep.subr.mxu0 0.0
        %412 = vmatpush1.msra.mxu0 0.0
        %413 = vmatprep.subr.mxu0 0.0
        %414 = vmatpush1.msra.mxu0 0.0
        %415 = vmatprep.subr.mxu0 0.0
        %416 = vmatpush1.msra.mxu0 0.0
        %417 = vmatprep.subr.mxu0 0.0
        %418 = vmatpush1.msra.mxu0 0.0
        %419 = vmatprep.subr.mxu0 %v362
        %420 = vmatpush1.msra.mxu0 %v361
        %421 = vmatprep.subr.mxu0 %v359
        %422 = vmatpush1.msra.mxu0 %v358
        %423 = vmatprep.subr.mxu0 0.0
        %424 = vmatpush2.msra.mxu0 0.0
        %425 = vmatprep.subr.mxu0 0.0
        %426 = vmatpush2.msra.mxu0 0.0
        %427 = vmatprep.subr.mxu0 0.0
        %428 = vmatpush2.msra.mxu0 0.0
        %429 = vmatprep.subr.mxu0 0.0
        %430 = vmatpush2.msra.mxu0 0.0
        %431 = vmatprep.subr.mxu0 0.0
        %432 = vmatpush2.msra.mxu0 0.0
        %433 = vmatprep.subr.mxu0 0.0
        %434 = vmatpush2.msra.mxu0 0.0
        %435 = vmatprep.subr.mxu0 0.0
        %436 = vmatpush2.msra.mxu0 0.0
        %437 = vmatprep.subr.mxu0 0.0
        %438 = vmatpush2.msra.mxu0 0.0
        %439 = vmatprep.subr.mxu0 0.0
        %440 = vmatpush2.msra.mxu0 0.0
        %441 = vmatprep.subr.mxu0 0.0
        %442 = vmatpush2.msra.mxu0 0.0
        %443 = vmatprep.subr.mxu0 0.0
        %444 = vmatpush2.msra.mxu0 0.0
        %445 = vmatprep.subr.mxu0 0.0
        %446 = vmatpush2.msra.mxu0 0.0
        %447 = vmatprep.subr.mxu0 0.0
        %448 = vmatpush2.msra.mxu0 0.0
        %449 = vmatprep.subr.mxu0 0.0
        %450 = vmatpush2.msra.mxu0 0.0
        %451 = vmatprep.subr.mxu0 0.0
        %452 = vmatpush2.msra.mxu0 0.0
        %453 = vmatprep.subr.mxu0 0.0
        %454 = vmatpush2.msra.mxu0 0.0
        %455 = vmatprep.mubr.f32.mxu0 0.0
        %456 = vmatmul.mubr.f32.gmra.mxu0 %v383
        %v457 = vpop.f32.mrf.mxu0
        %v458 = vadd.f32 %v369, %v457
        %v459 = vpop.f32.mrf.mxu0
        %v460 = vadd.f32 %v373, %v459
        %461 = vmatprep.mubr.f32.mxu0 0.0
        %462 = vmatmul.mubr.f32.gmra.mxu0 %v386
        %v463 = vpop.f32.mrf.mxu0
        %v464 = vadd.f32 %v369, %v463
        %v465 = vpop.f32.mrf.mxu0
        %v466 = vadd.f32 %v373, %v465
        %467 = vmatprep.mubr.f32.mxu0 0.0
        %468 = vmatmul.mubr.f32.gmra.mxu0 %v389
        %v469 = vpop.f32.mrf.mxu0
        %v470 = vadd.f32 %v369, %v469
        %v471 = vpop.f32.mrf.mxu0
        %v472 = vadd.f32 %v373, %v471
        %473 = vdwg.mxu0
        %474 = vmatprep.subr.mxu0 0.0
        %475 = vmatpush1.msra.mxu0 0.0
        %476 = vmatprep.subr.mxu0 0.0
        %477 = vmatpush1.msra.mxu0 0.0
        %478 = vmatprep.subr.mxu0 0.0
        %479 = vmatpush1.msra.mxu0 0.0
        %480 = vmatprep.subr.mxu0 0.0
        %481 = vmatpush1.msra.mxu0 0.0
        %482 = vmatprep.subr.mxu0 0.0
        %483 = vmatpush1.msra.mxu0 0.0
        %484 = vmatprep.subr.mxu0 0.0
        %485 = vmatpush1.msra.mxu0 0.0
        %486 = vmatprep.subr.mxu0 0.0
        %487 = vmatpush1.msra.mxu0 0.0
        %488 = vmatprep.subr.mxu0 0.0
        %489 = vmatpush1.msra.mxu0 0.0
        %490 = vmatprep.subr.mxu0 0.0
        %491 = vmatpush1.msra.mxu0 0.0
        %492 = vmatprep.subr.mxu0 0.0
        %493 = vmatpush1.msra.mxu0 0.0
        %494 = vmatprep.subr.mxu0 0.0
        %495 = vmatpush1.msra.mxu0 0.0
        %496 = vmatprep.subr.mxu0 0.0
        %497 = vmatpush1.msra.mxu0 0.0
        %498 = vmatprep.subr.mxu0 0.0
        %499 = vmatpush1.msra.mxu0 0.0
        %500 = vmatprep.subr.mxu0 0.0
        %501 = vmatpush1.msra.mxu0 0.0
        %502 = vmatprep.subr.mxu0 0.0
        %503 = vmatpush1.msra.mxu0 %v363
        %504 = vmatprep.subr.mxu0 0.0
        %505 = vmatpush1.msra.mxu0 %v360
        %506 = vmatprep.subr.mxu0 0.0
        %507 = vmatpush2.msra.mxu0 0.0
        %508 = vmatprep.subr.mxu0 0.0
        %509 = vmatpush2.msra.mxu0 0.0
        %510 = vmatprep.subr.mxu0 0.0
        %511 = vmatpush2.msra.mxu0 0.0
        %512 = vmatprep.subr.mxu0 0.0
        %513 = vmatpush2.msra.mxu0 0.0
        %514 = vmatprep.subr.mxu0 0.0
        %515 = vmatpush2.msra.mxu0 0.0
        %516 = vmatprep.subr.mxu0 0.0
        %517 = vmatpush2.msra.mxu0 0.0
        %518 = vmatprep.subr.mxu0 0.0
        %519 = vmatpush2.msra.mxu0 0.0
        %520 = vmatprep.subr.mxu0 0.0
        %521 = vmatpush2.msra.mxu0 0.0
        %522 = vmatprep.subr.mxu0 0.0
        %523 = vmatpush2.msra.mxu0 0.0
        %524 = vmatprep.subr.mxu0 0.0
        %525 = vmatpush2.msra.mxu0 0.0
        %526 = vmatprep.subr.mxu0 0.0
        %527 = vmatpush2.msra.mxu0 0.0
        %528 = vmatprep.subr.mxu0 0.0
        %529 = vmatpush2.msra.mxu0 0.0
        %530 = vmatprep.subr.mxu0 0.0
        %531 = vmatpush2.msra.mxu0 0.0
        %532 = vmatprep.subr.mxu0 0.0
        %533 = vmatpush2.msra.mxu0 0.0
        %534 = vmatprep.subr.mxu0 0.0
        %535 = vmatpush2.msra.mxu0 0.0
        %536 = vmatprep.subr.mxu0 0.0
        %537 = vmatpush2.msra.mxu0 0.0
        %538 = vmatprep.mubr.f32.mxu0 0.0
        %539 = vmatmul.mubr.f32.gmra.mxu0 %v383
        %v540 = vpop.f32.mrf.mxu0
        %v541 = vadd.f32 %v377, %v540
        %v542 = vpop.f32.mrf.mxu0
        %543 = vmatprep.mubr.f32.mxu0 0.0
        %544 = vmatmul.mubr.f32.gmra.mxu0 %v386
        %v545 = vpop.f32.mrf.mxu0
        %v546 = vadd.f32 %v377, %v545
        %v547 = vpop.f32.mrf.mxu0
        %548 = vmatprep.mubr.f32.mxu0 0.0
        %549 = vmatmul.mubr.f32.gmra.mxu0 %v389
        %v550 = vpop.f32.mrf.mxu0
        %v551 = vadd.f32 %v377, %v550
        %v552 = vpop.f32.mrf.mxu0
        %553 = vdwg.mxu0
        %554 = vst [vmem:[#allocation3] sm:$0xff] %v458
        %555 = vst [vmem:[#allocation3 + $0x8] sm:$0xff] %v460
        %556 = vst [vmem:[#allocation3 + $0x10] sm:$0xff] %v541
        %557 = vst [vmem:[#allocation3 + $0x18] sm:$0xff] %v464
        %558 = vst [vmem:[#allocation3 + $0x20] sm:$0xff] %v466
        %559 = vst [vmem:[#allocation3 + $0x28] sm:$0xff] %v546
        %560 = vst [vmem:[#allocation3 + $0x30] sm:$0xff] %v470
        %561 = vst [vmem:[#allocation3 + $0x38] sm:$0xff] %v472
        %562 = vst [vmem:[#allocation3 + $0x40] sm:$0xff] %v551
        %v563 = vld [vmem:[#allocation9] sm:$0xff]
        %v564 = vld [vmem:[#allocation9 + $0x8] sm:$0xff]
        %v565 = vld [vmem:[#allocation9 + $0x10] sm:$0xff]
        %v566 = vld [vmem:[#allocation9 + $0x18] sm:$0xff]
        %v567 = vld [vmem:[#allocation9 + $0x20] sm:$0xff]
        %v568 = vld [vmem:[#allocation9 + $0x28] sm:$0xff]
        %v569 = vld [vmem:[#allocation9 + $0x30] sm:$0xff]
        %v570 = vld [vmem:[#allocation9 + $0x38] sm:$0xff]
        %v571 = vld [vmem:[#allocation9 + $0x40] sm:$0xff]
        %v572 = vld [vmem:[#allocation9 + $0x48] sm:$0xff]
        %v573 = vld [vmem:[#allocation9 + $0x50] sm:$0xff]
        %v574 = vld [vmem:[#allocation9 + $0x58] sm:$0xff]
        %v575 = vld [vmem:[#allocation9 + $0x60] sm:$0xff]
        %v576 = vld [vmem:[#allocation9 + $0x68] sm:$0xff]
        %v577 = vld [vmem:[#allocation9 + $0x70] sm:$0xff]
        %v578 = vld [vmem:[#allocation9 + $0x78] sm:$0xff]
        %v579 = vld [vmem:[#allocation9 + $0x80] sm:$0xff]
        %v580 = vld [vmem:[#allocation9 + $0x88] sm:$0xff]
        %v581 = vld [vmem:[#allocation9 + $0x90] sm:$0xff]
        %v582 = vld [vmem:[#allocation9 + $0x98] sm:$0xff]
        %v583 = vld [vmem:[#allocation9 + $0xa0] sm:$0xff]
        %v584 = vld [vmem:[#allocation9 + $0xa8] sm:$0xff]
        %v585 = vld [vmem:[#allocation9 + $0xb0] sm:$0xff]
        %v586 = vld [vmem:[#allocation9 + $0xb8] sm:$0xff]
        %v587 = vld [vmem:[#allocation9 + $0xc0] sm:$0xff]
        %v588 = vld [vmem:[#allocation9 + $0xc8] sm:$0xff]
        %v589 = vld [vmem:[#allocation9 + $0xd0] sm:$0xff]
        %v590 = vld [vmem:[#allocation9 + $0xd8] sm:$0xff]
        %v591 = vld [vmem:[#allocation9 + $0xe0] sm:$0xff]
        %v592 = vld [vmem:[#allocation9 + $0xe8] sm:$0xff]
        %v593 = vld [vmem:[#allocation9 + $0xf0] sm:$0xff]
        %v594 = vld [vmem:[#allocation9 + $0xf8] sm:$0xff]
        %v595 = vld [vmem:[#allocation9 + $0x100] sm:$0xff]
        %v596 = vld [vmem:[#allocation9 + $0x108] sm:$0xff]
        %v597 = vld [vmem:[#allocation9 + $0x110] sm:$0xff]
        %v598 = vld [vmem:[#allocation9 + $0x118] sm:$0xff]
        %v599 = vld [vmem:[#allocation9 + $0x120] sm:$0xff]
        %v600 = vld [vmem:[#allocation9 + $0x128] sm:$0xff]
        %v601 = vld [vmem:[#allocation9 + $0x130] sm:$0xff]
        %v602 = vld [vmem:[#allocation9 + $0x138] sm:$0xff]
        %v603 = vld [vmem:[#allocation9 + $0x140] sm:$0xff]
        %v604 = vld [vmem:[#allocation9 + $0x148] sm:$0xff]
        %v605 = vld [vmem:[#allocation9 + $0x150] sm:$0xff]
        %v606 = vld [vmem:[#allocation9 + $0x158] sm:$0xff]
        %v607 = vld [vmem:[#allocation9 + $0x160] sm:$0xff]
        %v608 = vld [vmem:[#allocation9 + $0x168] sm:$0xff]
        %v609 = vld [vmem:[#allocation9 + $0x170] sm:$0xff]
        %v610 = vld [vmem:[#allocation9 + $0x178] sm:$0xff]
        %v611 = vld [vmem:[%s4] sm:$0x1]
        %v613 = vlaneseq
        %v614 = vshrl.u32 %v613, 7
        %v615 = vsub.s32 0, %v614
        %v616 = vrot.slane %v611, %v615
        %s618 = smul.u32 %s29, 3
        %p619 = scmp.lt.s32.totalorder %s29, 2
        // Predicated region
        $region69: #{tpu_custom_call.1} parent=47 // pred_check
          %p620 = pneg %p619
        $region70: #{tpu_custom_call.1} parent=47 // pred_check_branch
          %622 = sbr.rel (%p620) target = $region72
        $region71: #{tpu_custom_call.1} parent=47 // pred_region
          %v623 = vld [vmem:[#allocation2] sm:$0xff]
          %v624 = vld [vmem:[#allocation3] sm:$0xff]
          %v625 = vld [vmem:[#allocation3 + $0x8] sm:$0xff]
          %v626 = vld [vmem:[#allocation3 + $0x10] sm:$0xff]
          %627 = vmatprep.subr.mxu0 %v609
          %628 = vmatpush1.msra.mxu0 %v608
          %629 = vmatprep.subr.mxu0 %v606
          %630 = vmatpush1.msra.mxu0 %v605
          %631 = vmatprep.subr.mxu0 %v603
          %632 = vmatpush1.msra.mxu0 %v602
          %633 = vmatprep.subr.mxu0 %v600
          %634 = vmatpush1.msra.mxu0 %v599
          %635 = vmatprep.subr.mxu0 %v597
          %636 = vmatpush1.msra.mxu0 %v596
          %637 = vmatprep.subr.mxu0 %v594
          %638 = vmatpush1.msra.mxu0 %v593
          %639 = vmatprep.subr.mxu0 %v591
          %640 = vmatpush1.msra.mxu0 %v590
          %641 = vmatprep.subr.mxu0 %v588
          %642 = vmatpush1.msra.mxu0 %v587
          %643 = vmatprep.subr.mxu0 %v585
          %644 = vmatpush1.msra.mxu0 %v584
          %645 = vmatprep.subr.mxu0 %v582
          %646 = vmatpush1.msra.mxu0 %v581
          %647 = vmatprep.subr.mxu0 %v579
          %648 = vmatpush1.msra.mxu0 %v578
          %649 = vmatprep.subr.mxu0 %v576
          %650 = vmatpush1.msra.mxu0 %v575
          %651 = vmatprep.subr.mxu0 %v573
          %652 = vmatpush1.msra.mxu0 %v572
          %653 = vmatprep.subr.mxu0 %v570
          %654 = vmatpush1.msra.mxu0 %v569
          %655 = vmatprep.subr.mxu0 %v567
          %656 = vmatpush1.msra.mxu0 %v566
          %657 = vmatprep.subr.mxu0 %v564
          %658 = vmatpush1.msra.mxu0 %v563
          %659 = vmatprep.subr.mxu0 0.0
          %660 = vmatpush2.msra.mxu0 0.0
          %661 = vmatprep.subr.mxu0 0.0
          %662 = vmatpush2.msra.mxu0 0.0
          %663 = vmatprep.subr.mxu0 0.0
          %664 = vmatpush2.msra.mxu0 0.0
          %665 = vmatprep.subr.mxu0 0.0
          %666 = vmatpush2.msra.mxu0 0.0
          %667 = vmatprep.subr.mxu0 0.0
          %668 = vmatpush2.msra.mxu0 0.0
          %669 = vmatprep.subr.mxu0 0.0
          %670 = vmatpush2.msra.mxu0 0.0
          %671 = vmatprep.subr.mxu0 0.0
          %672 = vmatpush2.msra.mxu0 0.0
          %673 = vmatprep.subr.mxu0 0.0
          %674 = vmatpush2.msra.mxu0 0.0
          %675 = vmatprep.subr.mxu0 0.0
          %676 = vmatpush2.msra.mxu0 0.0
          %677 = vmatprep.subr.mxu0 0.0
          %678 = vmatpush2.msra.mxu0 0.0
          %679 = vmatprep.subr.mxu0 0.0
          %680 = vmatpush2.msra.mxu0 0.0
          %681 = vmatprep.subr.mxu0 0.0
          %682 = vmatpush2.msra.mxu0 0.0
          %683 = vmatprep.subr.mxu0 0.0
          %684 = vmatpush2.msra.mxu0 0.0
          %685 = vmatprep.subr.mxu0 0.0
          %686 = vmatpush2.msra.mxu0 0.0
          %687 = vmatprep.subr.mxu0 0.0
          %688 = vmatpush2.msra.mxu0 0.0
          %689 = vmatprep.subr.mxu0 0.0
          %690 = vmatpush2.msra.mxu0 0.0
          %691 = vmatprep.mubr.f32.mxu0 0.0
          %692 = vmatmul.mubr.f32.gmra.mxu0 %v623
          %v693 = vpop.f32.mrf.mxu0
          %v694 = vadd.f32 0.0, %v693
          %v695 = vpop.f32.mrf.mxu0
          %v696 = vadd.f32 0.0, %v695
          %697 = vdwg.mxu0
          %698 = vmatprep.subr.mxu0 0.0
          %699 = vmatpush1.msra.mxu0 %v610
          %700 = vmatprep.subr.mxu0 0.0
          %701 = vmatpush1.msra.mxu0 %v607
          %702 = vmatprep.subr.mxu0 0.0
          %703 = vmatpush1.msra.mxu0 %v604
          %704 = vmatprep.subr.mxu0 0.0
          %705 = vmatpush1.msra.mxu0 %v601
          %706 = vmatprep.subr.mxu0 0.0
          %707 = vmatpush1.msra.mxu0 %v598
          %708 = vmatprep.subr.mxu0 0.0
          %709 = vmatpush1.msra.mxu0 %v595
          %710 = vmatprep.subr.mxu0 0.0
          %711 = vmatpush1.msra.mxu0 %v592
          %712 = vmatprep.subr.mxu0 0.0
          %713 = vmatpush1.msra.mxu0 %v589
          %714 = vmatprep.subr.mxu0 0.0
          %715 = vmatpush1.msra.mxu0 %v586
          %716 = vmatprep.subr.mxu0 0.0
          %717 = vmatpush1.msra.mxu0 %v583
          %718 = vmatprep.subr.mxu0 0.0
          %719 = vmatpush1.msra.mxu0 %v580
          %720 = vmatprep.subr.mxu0 0.0
          %721 = vmatpush1.msra.mxu0 %v577
          %722 = vmatprep.subr.mxu0 0.0
          %723 = vmatpush1.msra.mxu0 %v574
          %724 = vmatprep.subr.mxu0 0.0
          %725 = vmatpush1.msra.mxu0 %v571
          %726 = vmatprep.subr.mxu0 0.0
          %727 = vmatpush1.msra.mxu0 %v568
          %728 = vmatprep.subr.mxu0 0.0
          %729 = vmatpush1.msra.mxu0 %v565
          %730 = vmatprep.subr.mxu0 0.0
          %731 = vmatpush2.msra.mxu0 0.0
          %732 = vmatprep.subr.mxu0 0.0
          %733 = vmatpush2.msra.mxu0 0.0
          %734 = vmatprep.subr.mxu0 0.0
          %735 = vmatpush2.msra.mxu0 0.0
          %736 = vmatprep.subr.mxu0 0.0
          %737 = vmatpush2.msra.mxu0 0.0
          %738 = vmatprep.subr.mxu0 0.0
          %739 = vmatpush2.msra.mxu0 0.0
          %740 = vmatprep.subr.mxu0 0.0
          %741 = vmatpush2.msra.mxu0 0.0
          %742 = vmatprep.subr.mxu0 0.0
          %743 = vmatpush2.msra.mxu0 0.0
          %744 = vmatprep.subr.mxu0 0.0
          %745 = vmatpush2.msra.mxu0 0.0
          %746 = vmatprep.subr.mxu0 0.0
          %747 = vmatpush2.msra.mxu0 0.0
          %748 = vmatprep.subr.mxu0 0.0
          %749 = vmatpush2.msra.mxu0 0.0
          %750 = vmatprep.subr.mxu0 0.0
          %751 = vmatpush2.msra.mxu0 0.0
          %752 = vmatprep.subr.mxu0 0.0
          %753 = vmatpush2.msra.mxu0 0.0
          %754 = vmatprep.subr.mxu0 0.0
          %755 = vmatpush2.msra.mxu0 0.0
          %756 = vmatprep.subr.mxu0 0.0
          %757 = vmatpush2.msra.mxu0 0.0
          %758 = vmatprep.subr.mxu0 0.0
          %759 = vmatpush2.msra.mxu0 0.0
          %760 = vmatprep.subr.mxu0 0.0
          %761 = vmatpush2.msra.mxu0 0.0
          %762 = vmatprep.mubr.f32.mxu0 0.0
          %763 = vmatmul.mubr.f32.gmra.mxu0 %v623
          %v764 = vpop.f32.mrf.mxu0
          %v765 = vadd.f32 0.0, %v764
          %v766 = vpop.f32.mrf.mxu0
          %767 = vdwg.mxu0
          %v768 = vadd.f32 %v624, %v694
          %v769 = vmul.f32 %v768, 0.5
          %v770 = vtanh.pop %v769
          %v771 = vmul.f32 %v770, 0.5
          %v772 = vadd.f32 %v771, 0.5
          %v773 = vadd.f32 %v625, %v696
          %v774 = vmul.f32 %v773, 0.5
          %v775 = vtanh.pop %v774
          %v776 = vmul.f32 %v775, 0.5
          %v777 = vadd.f32 %v776, 0.5
          %v778 = vadd.f32 %v765, %v616
          %v779 = vmul.f32 %v772, %v778
          %v780 = vadd.f32 %v626, %v779
          %v781 = vtanh.pop %v780
          %v782 = vsub.f32 1.0, %v777
          %v783 = vmul.f32 %v782, %v781
          %v784 = vmul.f32 %v777, %v623
          %v785 = vadd.f32 %v783, %v784
          %s786 = scalar_lea.vmem [#allocation3], 24
          %v787 = vld [vmem:[%s786] sm:$0xff]
          %v788 = vld [vmem:[%s786 + $0x8] sm:$0xff]
          %v789 = vld [vmem:[%s786 + $0x10] sm:$0xff]
          %790 = vmatprep.subr.mxu0 %v609
          %791 = vmatpush1.msra.mxu0 %v608
          %792 = vmatprep.subr.mxu0 %v606
          %793 = vmatpush1.msra.mxu0 %v605
          %794 = vmatprep.subr.mxu0 %v603
          %795 = vmatpush1.msra.mxu0 %v602
          %796 = vmatprep.subr.mxu0 %v600
          %797 = vmatpush1.msra.mxu0 %v599
          %798 = vmatprep.subr.mxu0 %v597
          %799 = vmatpush1.msra.mxu0 %v596
          %800 = vmatprep.subr.mxu0 %v594
          %801 = vmatpush1.msra.mxu0 %v593
          %802 = vmatprep.subr.mxu0 %v591
          %803 = vmatpush1.msra.mxu0 %v590
          %804 = vmatprep.subr.mxu0 %v588
          %805 = vmatpush1.msra.mxu0 %v587
          %806 = vmatprep.subr.mxu0 %v585
          %807 = vmatpush1.msra.mxu0 %v584
          %808 = vmatprep.subr.mxu0 %v582
          %809 = vmatpush1.msra.mxu0 %v581
          %810 = vmatprep.subr.mxu0 %v579
          %811 = vmatpush1.msra.mxu0 %v578
          %812 = vmatprep.subr.mxu0 %v576
          %813 = vmatpush1.msra.mxu0 %v575
          %814 = vmatprep.subr.mxu0 %v573
          %815 = vmatpush1.msra.mxu0 %v572
          %816 = vmatprep.subr.mxu0 %v570
          %817 = vmatpush1.msra.mxu0 %v569
          %818 = vmatprep.subr.mxu0 %v567
          %819 = vmatpush1.msra.mxu0 %v566
          %820 = vmatprep.subr.mxu0 %v564
          %821 = vmatpush1.msra.mxu0 %v563
          %822 = vmatprep.subr.mxu0 0.0
          %823 = vmatpush2.msra.mxu0 0.0
          %824 = vmatprep.subr.mxu0 0.0
          %825 = vmatpush2.msra.mxu0 0.0
          %826 = vmatprep.subr.mxu0 0.0
          %827 = vmatpush2.msra.mxu0 0.0
          %828 = vmatprep.subr.mxu0 0.0
          %829 = vmatpush2.msra.mxu0 0.0
          %830 = vmatprep.subr.mxu0 0.0
          %831 = vmatpush2.msra.mxu0 0.0
          %832 = vmatprep.subr.mxu0 0.0
          %833 = vmatpush2.msra.mxu0 0.0
          %834 = vmatprep.subr.mxu0 0.0
          %835 = vmatpush2.msra.mxu0 0.0
          %836 = vmatprep.subr.mxu0 0.0
          %837 = vmatpush2.msra.mxu0 0.0
          %838 = vmatprep.subr.mxu0 0.0
          %839 = vmatpush2.msra.mxu0 0.0
          %840 = vmatprep.subr.mxu0 0.0
          %841 = vmatpush2.msra.mxu0 0.0
          %842 = vmatprep.subr.mxu0 0.0
          %843 = vmatpush2.msra.mxu0 0.0
          %844 = vmatprep.subr.mxu0 0.0
          %845 = vmatpush2.msra.mxu0 0.0
          %846 = vmatprep.subr.mxu0 0.0
          %847 = vmatpush2.msra.mxu0 0.0
          %848 = vmatprep.subr.mxu0 0.0
          %849 = vmatpush2.msra.mxu0 0.0
          %850 = vmatprep.subr.mxu0 0.0
          %851 = vmatpush2.msra.mxu0 0.0
          %852 = vmatprep.subr.mxu0 0.0
          %853 = vmatpush2.msra.mxu0 0.0
          %854 = vmatprep.mubr.f32.mxu0 0.0
          %855 = vmatmul.mubr.f32.gmra.mxu0 %v785
          %v856 = vpop.f32.mrf.mxu0
          %v857 = vadd.f32 0.0, %v856
          %v858 = vpop.f32.mrf.mxu0
          %v859 = vadd.f32 0.0, %v858
          %860 = vdwg.mxu0
          %861 = vmatprep.subr.mxu0 0.0
          %862 = vmatpush1.msra.mxu0 %v610
          %863 = vmatprep.subr.mxu0 0.0
          %864 = vmatpush1.msra.mxu0 %v607
          %865 = vmatprep.subr.mxu0 0.0
          %866 = vmatpush1.msra.mxu0 %v604
          %867 = vmatprep.subr.mxu0 0.0
          %868 = vmatpush1.msra.mxu0 %v601
          %869 = vmatprep.subr.mxu0 0.0
          %870 = vmatpush1.msra.mxu0 %v598
          %871 = vmatprep.subr.mxu0 0.0
          %872 = vmatpush1.msra.mxu0 %v595
          %873 = vmatprep.subr.mxu0 0.0
          %874 = vmatpush1.msra.mxu0 %v592
          %875 = vmatprep.subr.mxu0 0.0
          %876 = vmatpush1.msra.mxu0 %v589
          %877 = vmatprep.subr.mxu0 0.0
          %878 = vmatpush1.msra.mxu0 %v586
          %879 = vmatprep.subr.mxu0 0.0
          %880 = vmatpush1.msra.mxu0 %v583
          %881 = vmatprep.subr.mxu0 0.0
          %882 = vmatpush1.msra.mxu0 %v580
          %883 = vmatprep.subr.mxu0 0.0
          %884 = vmatpush1.msra.mxu0 %v577
          %885 = vmatprep.subr.mxu0 0.0
          %886 = vmatpush1.msra.mxu0 %v574
          %887 = vmatprep.subr.mxu0 0.0
          %888 = vmatpush1.msra.mxu0 %v571
          %889 = vmatprep.subr.mxu0 0.0
          %890 = vmatpush1.msra.mxu0 %v568
          %891 = vmatprep.subr.mxu0 0.0
          %892 = vmatpush1.msra.mxu0 %v565
          %893 = vmatprep.subr.mxu0 0.0
          %894 = vmatpush2.msra.mxu0 0.0
          %895 = vmatprep.subr.mxu0 0.0
          %896 = vmatpush2.msra.mxu0 0.0
          %897 = vmatprep.subr.mxu0 0.0
          %898 = vmatpush2.msra.mxu0 0.0
          %899 = vmatprep.subr.mxu0 0.0
          %900 = vmatpush2.msra.mxu0 0.0
          %901 = vmatprep.subr.mxu0 0.0
          %902 = vmatpush2.msra.mxu0 0.0
          %903 = vmatprep.subr.mxu0 0.0
          %904 = vmatpush2.msra.mxu0 0.0
          %905 = vmatprep.subr.mxu0 0.0
          %906 = vmatpush2.msra.mxu0 0.0
          %907 = vmatprep.subr.mxu0 0.0
          %908 = vmatpush2.msra.mxu0 0.0
          %909 = vmatprep.subr.mxu0 0.0
          %910 = vmatpush2.msra.mxu0 0.0
          %911 = vmatprep.subr.mxu0 0.0
          %912 = vmatpush2.msra.mxu0 0.0
          %913 = vmatprep.subr.mxu0 0.0
          %914 = vmatpush2.msra.mxu0 0.0
          %915 = vmatprep.subr.mxu0 0.0
          %916 = vmatpush2.msra.mxu0 0.0
          %917 = vmatprep.subr.mxu0 0.0
          %918 = vmatpush2.msra.mxu0 0.0
          %919 = vmatprep.subr.mxu0 0.0
          %920 = vmatpush2.msra.mxu0 0.0
          %921 = vmatprep.subr.mxu0 0.0
          %922 = vmatpush2.msra.mxu0 0.0
          %923 = vmatprep.subr.mxu0 0.0
          %924 = vmatpush2.msra.mxu0 0.0
          %925 = vmatprep.mubr.f32.mxu0 0.0
          %926 = vmatmul.mubr.f32.gmra.mxu0 %v785
          %v927 = vpop.f32.mrf.mxu0
          %v928 = vadd.f32 0.0, %v927
          %v929 = vpop.f32.mrf.mxu0
          %930 = vdwg.mxu0
          %v931 = vadd.f32 %v787, %v857
          %v932 = vmul.f32 %v931, 0.5
          %v933 = vtanh.pop %v932
          %v934 = vmul.f32 %v933, 0.5
          %v935 = vadd.f32 %v934, 0.5
          %v936 = vadd.f32 %v788, %v859
          %v937 = vmul.f32 %v936, 0.5
          %v938 = vtanh.pop %v937
          %v939 = vmul.f32 %v938, 0.5
          %v940 = vadd.f32 %v939, 0.5
          %v941 = vadd.f32 %v928, %v616
          %v942 = vmul.f32 %v935, %v941
          %v943 = vadd.f32 %v789, %v942
          %v944 = vtanh.pop %v943
          %v945 = vsub.f32 1.0, %v940
          %v946 = vmul.f32 %v945, %v944
          %v947 = vmul.f32 %v940, %v785
          %v948 = vadd.f32 %v946, %v947
          %s949 = scalar_lea.vmem [#allocation3], 48
          %v950 = vld [vmem:[%s949] sm:$0xff]
          %v951 = vld [vmem:[%s949 + $0x8] sm:$0xff]
          %v952 = vld [vmem:[%s949 + $0x10] sm:$0xff]
          %953 = vmatprep.subr.mxu0 %v609
          %954 = vmatpush1.msra.mxu0 %v608
          %955 = vmatprep.subr.mxu0 %v606
          %956 = vmatpush1.msra.mxu0 %v605
          %957 = vmatprep.subr.mxu0 %v603
          %958 = vmatpush1.msra.mxu0 %v602
          %959 = vmatprep.subr.mxu0 %v600
          %960 = vmatpush1.msra.mxu0 %v599
          %961 = vmatprep.subr.mxu0 %v597
          %962 = vmatpush1.msra.mxu0 %v596
          %963 = vmatprep.subr.mxu0 %v594
          %964 = vmatpush1.msra.mxu0 %v593
          %965 = vmatprep.subr.mxu0 %v591
          %966 = vmatpush1.msra.mxu0 %v590
          %967 = vmatprep.subr.mxu0 %v588
          %968 = vmatpush1.msra.mxu0 %v587
          %969 = vmatprep.subr.mxu0 %v585
          %970 = vmatpush1.msra.mxu0 %v584
          %971 = vmatprep.subr.mxu0 %v582
          %972 = vmatpush1.msra.mxu0 %v581
          %973 = vmatprep.subr.mxu0 %v579
          %974 = vmatpush1.msra.mxu0 %v578
          %975 = vmatprep.subr.mxu0 %v576
          %976 = vmatpush1.msra.mxu0 %v575
          %977 = vmatprep.subr.mxu0 %v573
          %978 = vmatpush1.msra.mxu0 %v572
          %979 = vmatprep.subr.mxu0 %v570
          %980 = vmatpush1.msra.mxu0 %v569
          %981 = vmatprep.subr.mxu0 %v567
          %982 = vmatpush1.msra.mxu0 %v566
          %983 = vmatprep.subr.mxu0 %v564
          %984 = vmatpush1.msra.mxu0 %v563
          %985 = vmatprep.subr.mxu0 0.0
          %986 = vmatpush2.msra.mxu0 0.0
          %987 = vmatprep.subr.mxu0 0.0
          %988 = vmatpush2.msra.mxu0 0.0
          %989 = vmatprep.subr.mxu0 0.0
          %990 = vmatpush2.msra.mxu0 0.0
          %991 = vmatprep.subr.mxu0 0.0
          %992 = vmatpush2.msra.mxu0 0.0
          %993 = vmatprep.subr.mxu0 0.0
          %994 = vmatpush2.msra.mxu0 0.0
          %995 = vmatprep.subr.mxu0 0.0
          %996 = vmatpush2.msra.mxu0 0.0
          %997 = vmatprep.subr.mxu0 0.0
          %998 = vmatpush2.msra.mxu0 0.0
          %999 = vmatprep.subr.mxu0 0.0
          %1000 = vmatpush2.msra.mxu0 0.0
          %1001 = vmatprep.subr.mxu0 0.0
          %1002 = vmatpush2.msra.mxu0 0.0
          %1003 = vmatprep.subr.mxu0 0.0
          %1004 = vmatpush2.msra.mxu0 0.0
          %1005 = vmatprep.subr.mxu0 0.0
          %1006 = vmatpush2.msra.mxu0 0.0
          %1007 = vmatprep.subr.mxu0 0.0
          %1008 = vmatpush2.msra.mxu0 0.0
          %1009 = vmatprep.subr.mxu0 0.0
          %1010 = vmatpush2.msra.mxu0 0.0
          %1011 = vmatprep.subr.mxu0 0.0
          %1012 = vmatpush2.msra.mxu0 0.0
          %1013 = vmatprep.subr.mxu0 0.0
          %1014 = vmatpush2.msra.mxu0 0.0
          %1015 = vmatprep.subr.mxu0 0.0
          %1016 = vmatpush2.msra.mxu0 0.0
          %1017 = vmatprep.mubr.f32.mxu0 0.0
          %1018 = vmatmul.mubr.f32.gmra.mxu0 %v948
          %v1019 = vpop.f32.mrf.mxu0
          %v1020 = vadd.f32 0.0, %v1019
          %v1021 = vpop.f32.mrf.mxu0
          %v1022 = vadd.f32 0.0, %v1021
          %1023 = vdwg.mxu0
          %1024 = vmatprep.subr.mxu0 0.0
          %1025 = vmatpush1.msra.mxu0 %v610
          %1026 = vmatprep.subr.mxu0 0.0
          %1027 = vmatpush1.msra.mxu0 %v607
          %1028 = vmatprep.subr.mxu0 0.0
          %1029 = vmatpush1.msra.mxu0 %v604
          %1030 = vmatprep.subr.mxu0 0.0
          %1031 = vmatpush1.msra.mxu0 %v601
          %1032 = vmatprep.subr.mxu0 0.0
          %1033 = vmatpush1.msra.mxu0 %v598
          %1034 = vmatprep.subr.mxu0 0.0
          %1035 = vmatpush1.msra.mxu0 %v595
          %1036 = vmatprep.subr.mxu0 0.0
          %1037 = vmatpush1.msra.mxu0 %v592
          %1038 = vmatprep.subr.mxu0 0.0
          %1039 = vmatpush1.msra.mxu0 %v589
          %1040 = vmatprep.subr.mxu0 0.0
          %1041 = vmatpush1.msra.mxu0 %v586
          %1042 = vmatprep.subr.mxu0 0.0
          %1043 = vmatpush1.msra.mxu0 %v583
          %1044 = vmatprep.subr.mxu0 0.0
          %1045 = vmatpush1.msra.mxu0 %v580
          %1046 = vmatprep.subr.mxu0 0.0
          %1047 = vmatpush1.msra.mxu0 %v577
          %1048 = vmatprep.subr.mxu0 0.0
          %1049 = vmatpush1.msra.mxu0 %v574
          %1050 = vmatprep.subr.mxu0 0.0
          %1051 = vmatpush1.msra.mxu0 %v571
          %1052 = vmatprep.subr.mxu0 0.0
          %1053 = vmatpush1.msra.mxu0 %v568
          %1054 = vmatprep.subr.mxu0 0.0
          %1055 = vmatpush1.msra.mxu0 %v565
          %1056 = vmatprep.subr.mxu0 0.0
          %1057 = vmatpush2.msra.mxu0 0.0
          %1058 = vmatprep.subr.mxu0 0.0
          %1059 = vmatpush2.msra.mxu0 0.0
          %1060 = vmatprep.subr.mxu0 0.0
          %1061 = vmatpush2.msra.mxu0 0.0
          %1062 = vmatprep.subr.mxu0 0.0
          %1063 = vmatpush2.msra.mxu0 0.0
          %1064 = vmatprep.subr.mxu0 0.0
          %1065 = vmatpush2.msra.mxu0 0.0
          %1066 = vmatprep.subr.mxu0 0.0
          %1067 = vmatpush2.msra.mxu0 0.0
          %1068 = vmatprep.subr.mxu0 0.0
          %1069 = vmatpush2.msra.mxu0 0.0
          %1070 = vmatprep.subr.mxu0 0.0
          %1071 = vmatpush2.msra.mxu0 0.0
          %1072 = vmatprep.subr.mxu0 0.0
          %1073 = vmatpush2.msra.mxu0 0.0
          %1074 = vmatprep.subr.mxu0 0.0
          %1075 = vmatpush2.msra.mxu0 0.0
          %1076 = vmatprep.subr.mxu0 0.0
          %1077 = vmatpush2.msra.mxu0 0.0
          %1078 = vmatprep.subr.mxu0 0.0
          %1079 = vmatpush2.msra.mxu0 0.0
          %1080 = vmatprep.subr.mxu0 0.0
          %1081 = vmatpush2.msra.mxu0 0.0
          %1082 = vmatprep.subr.mxu0 0.0
          %1083 = vmatpush2.msra.mxu0 0.0
          %1084 = vmatprep.subr.mxu0 0.0
          %1085 = vmatpush2.msra.mxu0 0.0
          %1086 = vmatprep.subr.mxu0 0.0
          %1087 = vmatpush2.msra.mxu0 0.0
          %1088 = vmatprep.mubr.f32.mxu0 0.0
          %1089 = vmatmul.mubr.f32.gmra.mxu0 %v948
          %v1090 = vpop.f32.mrf.mxu0
          %v1091 = vadd.f32 0.0, %v1090
          %v1092 = vpop.f32.mrf.mxu0
          %1093 = vdwg.mxu0
          %v1094 = vadd.f32 %v950, %v1020
          %v1095 = vmul.f32 %v1094, 0.5
          %v1096 = vtanh.pop %v1095
          %v1097 = vmul.f32 %v1096, 0.5
          %v1098 = vadd.f32 %v1097, 0.5
          %v1099 = vadd.f32 %v951, %v1022
          %v1100 = vmul.f32 %v1099, 0.5
          %v1101 = vtanh.pop %v1100
          %v1102 = vmul.f32 %v1101, 0.5
          %v1103 = vadd.f32 %v1102, 0.5
          %v1104 = vadd.f32 %v1091, %v616
          %v1105 = vmul.f32 %v1098, %v1104
          %v1106 = vadd.f32 %v952, %v1105
          %v1107 = vtanh.pop %v1106
          %v1108 = vsub.f32 1.0, %v1103
          %v1109 = vmul.f32 %v1108, %v1107
          %v1110 = vmul.f32 %v1103, %v948
          %v1111 = vadd.f32 %v1109, %v1110
          %1112 = vst [vmem:[#allocation2] sm:$0xff] %v1111
        $region72: #{tpu_custom_call.1} parent=47 // pred_fallthru
          _
        %p1113 = scmp.eq.s32.totalorder %s29, 2
        // Predicated region
        $region73: #{tpu_custom_call.1} parent=47 // pred_check
          %p1114 = pneg %p1113
        $region74: #{tpu_custom_call.1} parent=47 // pred_check_branch
          %1116 = sbr.rel (%p1114) target = $region76
        $region75: #{tpu_custom_call.1} parent=47 // pred_region
          %v1117 = vld [vmem:[#allocation2] sm:$0xff]
          %v1118 = vld [vmem:[#allocation3] sm:$0xff]
          %v1119 = vld [vmem:[#allocation3 + $0x8] sm:$0xff]
          %v1120 = vld [vmem:[#allocation3 + $0x10] sm:$0xff]
          %1121 = vmatprep.subr.mxu0 %v609
          %1122 = vmatpush1.msra.mxu0 %v608
          %1123 = vmatprep.subr.mxu0 %v606
          %1124 = vmatpush1.msra.mxu0 %v605
          %1125 = vmatprep.subr.mxu0 %v603
          %1126 = vmatpush1.msra.mxu0 %v602
          %1127 = vmatprep.subr.mxu0 %v600
          %1128 = vmatpush1.msra.mxu0 %v599
          %1129 = vmatprep.subr.mxu0 %v597
          %1130 = vmatpush1.msra.mxu0 %v596
          %1131 = vmatprep.subr.mxu0 %v594
          %1132 = vmatpush1.msra.mxu0 %v593
          %1133 = vmatprep.subr.mxu0 %v591
          %1134 = vmatpush1.msra.mxu0 %v590
          %1135 = vmatprep.subr.mxu0 %v588
          %1136 = vmatpush1.msra.mxu0 %v587
          %1137 = vmatprep.subr.mxu0 %v585
          %1138 = vmatpush1.msra.mxu0 %v584
          %1139 = vmatprep.subr.mxu0 %v582
          %1140 = vmatpush1.msra.mxu0 %v581
          %1141 = vmatprep.subr.mxu0 %v579
          %1142 = vmatpush1.msra.mxu0 %v578
          %1143 = vmatprep.subr.mxu0 %v576
          %1144 = vmatpush1.msra.mxu0 %v575
          %1145 = vmatprep.subr.mxu0 %v573
          %1146 = vmatpush1.msra.mxu0 %v572
          %1147 = vmatprep.subr.mxu0 %v570
          %1148 = vmatpush1.msra.mxu0 %v569
          %1149 = vmatprep.subr.mxu0 %v567
          %1150 = vmatpush1.msra.mxu0 %v566
          %1151 = vmatprep.subr.mxu0 %v564
          %1152 = vmatpush1.msra.mxu0 %v563
          %1153 = vmatprep.subr.mxu0 0.0
          %1154 = vmatpush2.msra.mxu0 0.0
          %1155 = vmatprep.subr.mxu0 0.0
          %1156 = vmatpush2.msra.mxu0 0.0
          %1157 = vmatprep.subr.mxu0 0.0
          %1158 = vmatpush2.msra.mxu0 0.0
          %1159 = vmatprep.subr.mxu0 0.0
          %1160 = vmatpush2.msra.mxu0 0.0
          %1161 = vmatprep.subr.mxu0 0.0
          %1162 = vmatpush2.msra.mxu0 0.0
          %1163 = vmatprep.subr.mxu0 0.0
          %1164 = vmatpush2.msra.mxu0 0.0
          %1165 = vmatprep.subr.mxu0 0.0
          %1166 = vmatpush2.msra.mxu0 0.0
          %1167 = vmatprep.subr.mxu0 0.0
          %1168 = vmatpush2.msra.mxu0 0.0
          %1169 = vmatprep.subr.mxu0 0.0
          %1170 = vmatpush2.msra.mxu0 0.0
          %1171 = vmatprep.subr.mxu0 0.0
          %1172 = vmatpush2.msra.mxu0 0.0
          %1173 = vmatprep.subr.mxu0 0.0
          %1174 = vmatpush2.msra.mxu0 0.0
          %1175 = vmatprep.subr.mxu0 0.0
          %1176 = vmatpush2.msra.mxu0 0.0
          %1177 = vmatprep.subr.mxu0 0.0
          %1178 = vmatpush2.msra.mxu0 0.0
          %1179 = vmatprep.subr.mxu0 0.0
          %1180 = vmatpush2.msra.mxu0 0.0
          %1181 = vmatprep.subr.mxu0 0.0
          %1182 = vmatpush2.msra.mxu0 0.0
          %1183 = vmatprep.subr.mxu0 0.0
          %1184 = vmatpush2.msra.mxu0 0.0
          %1185 = vmatprep.mubr.f32.mxu0 0.0
          %1186 = vmatmul.mubr.f32.gmra.mxu0 %v1117
          %v1187 = vpop.f32.mrf.mxu0
          %v1188 = vadd.f32 0.0, %v1187
          %v1189 = vpop.f32.mrf.mxu0
          %v1190 = vadd.f32 0.0, %v1189
          %1191 = vdwg.mxu0
          %1192 = vmatprep.subr.mxu0 0.0
          %1193 = vmatpush1.msra.mxu0 %v610
          %1194 = vmatprep.subr.mxu0 0.0
          %1195 = vmatpush1.msra.mxu0 %v607
          %1196 = vmatprep.subr.mxu0 0.0
          %1197 = vmatpush1.msra.mxu0 %v604
          %1198 = vmatprep.subr.mxu0 0.0
          %1199 = vmatpush1.msra.mxu0 %v601
          %1200 = vmatprep.subr.mxu0 0.0
          %1201 = vmatpush1.msra.mxu0 %v598
          %1202 = vmatprep.subr.mxu0 0.0
          %1203 = vmatpush1.msra.mxu0 %v595
          %1204 = vmatprep.subr.mxu0 0.0
          %1205 = vmatpush1.msra.mxu0 %v592
          %1206 = vmatprep.subr.mxu0 0.0
          %1207 = vmatpush1.msra.mxu0 %v589
          %1208 = vmatprep.subr.mxu0 0.0
          %1209 = vmatpush1.msra.mxu0 %v586
          %1210 = vmatprep.subr.mxu0 0.0
          %1211 = vmatpush1.msra.mxu0 %v583
          %1212 = vmatprep.subr.mxu0 0.0
          %1213 = vmatpush1.msra.mxu0 %v580
          %1214 = vmatprep.subr.mxu0 0.0
          %1215 = vmatpush1.msra.mxu0 %v577
          %1216 = vmatprep.subr.mxu0 0.0
          %1217 = vmatpush1.msra.mxu0 %v574
          %1218 = vmatprep.subr.mxu0 0.0
          %1219 = vmatpush1.msra.mxu0 %v571
          %1220 = vmatprep.subr.mxu0 0.0
          %1221 = vmatpush1.msra.mxu0 %v568
          %1222 = vmatprep.subr.mxu0 0.0
          %1223 = vmatpush1.msra.mxu0 %v565
          %1224 = vmatprep.subr.mxu0 0.0
          %1225 = vmatpush2.msra.mxu0 0.0
          %1226 = vmatprep.subr.mxu0 0.0
          %1227 = vmatpush2.msra.mxu0 0.0
          %1228 = vmatprep.subr.mxu0 0.0
          %1229 = vmatpush2.msra.mxu0 0.0
          %1230 = vmatprep.subr.mxu0 0.0
          %1231 = vmatpush2.msra.mxu0 0.0
          %1232 = vmatprep.subr.mxu0 0.0
          %1233 = vmatpush2.msra.mxu0 0.0
          %1234 = vmatprep.subr.mxu0 0.0
          %1235 = vmatpush2.msra.mxu0 0.0
          %1236 = vmatprep.subr.mxu0 0.0
          %1237 = vmatpush2.msra.mxu0 0.0
          %1238 = vmatprep.subr.mxu0 0.0
          %1239 = vmatpush2.msra.mxu0 0.0
          %1240 = vmatprep.subr.mxu0 0.0
          %1241 = vmatpush2.msra.mxu0 0.0
          %1242 = vmatprep.subr.mxu0 0.0
          %1243 = vmatpush2.msra.mxu0 0.0
          %1244 = vmatprep.subr.mxu0 0.0
          %1245 = vmatpush2.msra.mxu0 0.0
          %1246 = vmatprep.subr.mxu0 0.0
          %1247 = vmatpush2.msra.mxu0 0.0
          %1248 = vmatprep.subr.mxu0 0.0
          %1249 = vmatpush2.msra.mxu0 0.0
          %1250 = vmatprep.subr.mxu0 0.0
          %1251 = vmatpush2.msra.mxu0 0.0
          %1252 = vmatprep.subr.mxu0 0.0
          %1253 = vmatpush2.msra.mxu0 0.0
          %1254 = vmatprep.subr.mxu0 0.0
          %1255 = vmatpush2.msra.mxu0 0.0
          %1256 = vmatprep.mubr.f32.mxu0 0.0
          %1257 = vmatmul.mubr.f32.gmra.mxu0 %v1117
          %v1258 = vpop.f32.mrf.mxu0
          %v1259 = vadd.f32 0.0, %v1258
          %v1260 = vpop.f32.mrf.mxu0
          %1261 = vdwg.mxu0
          %v1262 = vadd.f32 %v1118, %v1188
          %v1263 = vmul.f32 %v1262, 0.5
          %v1264 = vtanh.pop %v1263
          %v1265 = vmul.f32 %v1264, 0.5
          %v1266 = vadd.f32 %v1265, 0.5
          %v1267 = vadd.f32 %v1119, %v1190
          %v1268 = vmul.f32 %v1267, 0.5
          %v1269 = vtanh.pop %v1268
          %v1270 = vmul.f32 %v1269, 0.5
          %v1271 = vadd.f32 %v1270, 0.5
          %v1272 = vadd.f32 %v1259, %v616
          %v1273 = vmul.f32 %v1266, %v1272
          %v1274 = vadd.f32 %v1120, %v1273
          %v1275 = vtanh.pop %v1274
          %v1276 = vsub.f32 1.0, %v1271
          %v1277 = vmul.f32 %v1276, %v1275
          %v1278 = vmul.f32 %v1271, %v1117
          %v1279 = vadd.f32 %v1277, %v1278
          %p1280 = scmp.lt.s32.totalorder %s618, 8
          %s1281 = scalar_select %p1280, 1, 0
          %v1282 = vstv %s1281
          %vm1283 = vcmp.eq.s32.totalorder %v1282, 1
          %v1284 = vsel %vm1283, %v1279, %v1117
          %s1285 = scalar_lea.vmem [#allocation3], 24
          %v1286 = vld [vmem:[%s1285] sm:$0xff]
          %v1287 = vld [vmem:[%s1285 + $0x8] sm:$0xff]
          %v1288 = vld [vmem:[%s1285 + $0x10] sm:$0xff]
          %1289 = vmatprep.subr.mxu0 %v609
          %1290 = vmatpush1.msra.mxu0 %v608
          %1291 = vmatprep.subr.mxu0 %v606
          %1292 = vmatpush1.msra.mxu0 %v605
          %1293 = vmatprep.subr.mxu0 %v603
          %1294 = vmatpush1.msra.mxu0 %v602
          %1295 = vmatprep.subr.mxu0 %v600
          %1296 = vmatpush1.msra.mxu0 %v599
          %1297 = vmatprep.subr.mxu0 %v597
          %1298 = vmatpush1.msra.mxu0 %v596
          %1299 = vmatprep.subr.mxu0 %v594
          %1300 = vmatpush1.msra.mxu0 %v593
          %1301 = vmatprep.subr.mxu0 %v591
          %1302 = vmatpush1.msra.mxu0 %v590
          %1303 = vmatprep.subr.mxu0 %v588
          %1304 = vmatpush1.msra.mxu0 %v587
          %1305 = vmatprep.subr.mxu0 %v585
          %1306 = vmatpush1.msra.mxu0 %v584
          %1307 = vmatprep.subr.mxu0 %v582
          %1308 = vmatpush1.msra.mxu0 %v581
          %1309 = vmatprep.subr.mxu0 %v579
          %1310 = vmatpush1.msra.mxu0 %v578
          %1311 = vmatprep.subr.mxu0 %v576
          %1312 = vmatpush1.msra.mxu0 %v575
          %1313 = vmatprep.subr.mxu0 %v573
          %1314 = vmatpush1.msra.mxu0 %v572
          %1315 = vmatprep.subr.mxu0 %v570
          %1316 = vmatpush1.msra.mxu0 %v569
          %1317 = vmatprep.subr.mxu0 %v567
          %1318 = vmatpush1.msra.mxu0 %v566
          %1319 = vmatprep.subr.mxu0 %v564
          %1320 = vmatpush1.msra.mxu0 %v563
          %1321 = vmatprep.subr.mxu0 0.0
          %1322 = vmatpush2.msra.mxu0 0.0
          %1323 = vmatprep.subr.mxu0 0.0
          %1324 = vmatpush2.msra.mxu0 0.0
          %1325 = vmatprep.subr.mxu0 0.0
          %1326 = vmatpush2.msra.mxu0 0.0
          %1327 = vmatprep.subr.mxu0 0.0
          %1328 = vmatpush2.msra.mxu0 0.0
          %1329 = vmatprep.subr.mxu0 0.0
          %1330 = vmatpush2.msra.mxu0 0.0
          %1331 = vmatprep.subr.mxu0 0.0
          %1332 = vmatpush2.msra.mxu0 0.0
          %1333 = vmatprep.subr.mxu0 0.0
          %1334 = vmatpush2.msra.mxu0 0.0
          %1335 = vmatprep.subr.mxu0 0.0
          %1336 = vmatpush2.msra.mxu0 0.0
          %1337 = vmatprep.subr.mxu0 0.0
          %1338 = vmatpush2.msra.mxu0 0.0
          %1339 = vmatprep.subr.mxu0 0.0
          %1340 = vmatpush2.msra.mxu0 0.0
          %1341 = vmatprep.subr.mxu0 0.0
          %1342 = vmatpush2.msra.mxu0 0.0
          %1343 = vmatprep.subr.mxu0 0.0
          %1344 = vmatpush2.msra.mxu0 0.0
          %1345 = vmatprep.subr.mxu0 0.0
          %1346 = vmatpush2.msra.mxu0 0.0
          %1347 = vmatprep.subr.mxu0 0.0
          %1348 = vmatpush2.msra.mxu0 0.0
          %1349 = vmatprep.subr.mxu0 0.0
          %1350 = vmatpush2.msra.mxu0 0.0
          %1351 = vmatprep.subr.mxu0 0.0
          %1352 = vmatpush2.msra.mxu0 0.0
          %1353 = vmatprep.mubr.f32.mxu0 0.0
          %1354 = vmatmul.mubr.f32.gmra.mxu0 %v1284
          %v1355 = vpop.f32.mrf.mxu0
          %v1356 = vadd.f32 0.0, %v1355
          %v1357 = vpop.f32.mrf.mxu0
          %v1358 = vadd.f32 0.0, %v1357
          %1359 = vdwg.mxu0
          %1360 = vmatprep.subr.mxu0 0.0
          %1361 = vmatpush1.msra.mxu0 %v610
          %1362 = vmatprep.subr.mxu0 0.0
          %1363 = vmatpush1.msra.mxu0 %v607
          %1364 = vmatprep.subr.mxu0 0.0
          %1365 = vmatpush1.msra.mxu0 %v604
          %1366 = vmatprep.subr.mxu0 0.0
          %1367 = vmatpush1.msra.mxu0 %v601
          %1368 = vmatprep.subr.mxu0 0.0
          %1369 = vmatpush1.msra.mxu0 %v598
          %1370 = vmatprep.subr.mxu0 0.0
          %1371 = vmatpush1.msra.mxu0 %v595
          %1372 = vmatprep.subr.mxu0 0.0
          %1373 = vmatpush1.msra.mxu0 %v592
          %1374 = vmatprep.subr.mxu0 0.0
          %1375 = vmatpush1.msra.mxu0 %v589
          %1376 = vmatprep.subr.mxu0 0.0
          %1377 = vmatpush1.msra.mxu0 %v586
          %1378 = vmatprep.subr.mxu0 0.0
          %1379 = vmatpush1.msra.mxu0 %v583
          %1380 = vmatprep.subr.mxu0 0.0
          %1381 = vmatpush1.msra.mxu0 %v580
          %1382 = vmatprep.subr.mxu0 0.0
          %1383 = vmatpush1.msra.mxu0 %v577
          %1384 = vmatprep.subr.mxu0 0.0
          %1385 = vmatpush1.msra.mxu0 %v574
          %1386 = vmatprep.subr.mxu0 0.0
          %1387 = vmatpush1.msra.mxu0 %v571
          %1388 = vmatprep.subr.mxu0 0.0
          %1389 = vmatpush1.msra.mxu0 %v568
          %1390 = vmatprep.subr.mxu0 0.0
          %1391 = vmatpush1.msra.mxu0 %v565
          %1392 = vmatprep.subr.mxu0 0.0
          %1393 = vmatpush2.msra.mxu0 0.0
          %1394 = vmatprep.subr.mxu0 0.0
          %1395 = vmatpush2.msra.mxu0 0.0
          %1396 = vmatprep.subr.mxu0 0.0
          %1397 = vmatpush2.msra.mxu0 0.0
          %1398 = vmatprep.subr.mxu0 0.0
          %1399 = vmatpush2.msra.mxu0 0.0
          %1400 = vmatprep.subr.mxu0 0.0
          %1401 = vmatpush2.msra.mxu0 0.0
          %1402 = vmatprep.subr.mxu0 0.0
          %1403 = vmatpush2.msra.mxu0 0.0
          %1404 = vmatprep.subr.mxu0 0.0
          %1405 = vmatpush2.msra.mxu0 0.0
          %1406 = vmatprep.subr.mxu0 0.0
          %1407 = vmatpush2.msra.mxu0 0.0
          %1408 = vmatprep.subr.mxu0 0.0
          %1409 = vmatpush2.msra.mxu0 0.0
          %1410 = vmatprep.subr.mxu0 0.0
          %1411 = vmatpush2.msra.mxu0 0.0
          %1412 = vmatprep.subr.mxu0 0.0
          %1413 = vmatpush2.msra.mxu0 0.0
          %1414 = vmatprep.subr.mxu0 0.0
          %1415 = vmatpush2.msra.mxu0 0.0
          %1416 = vmatprep.subr.mxu0 0.0
          %1417 = vmatpush2.msra.mxu0 0.0
          %1418 = vmatprep.subr.mxu0 0.0
          %1419 = vmatpush2.msra.mxu0 0.0
          %1420 = vmatprep.subr.mxu0 0.0
          %1421 = vmatpush2.msra.mxu0 0.0
          %1422 = vmatprep.subr.mxu0 0.0
          %1423 = vmatpush2.msra.mxu0 0.0
          %1424 = vmatprep.mubr.f32.mxu0 0.0
          %1425 = vmatmul.mubr.f32.gmra.mxu0 %v1284
          %v1426 = vpop.f32.mrf.mxu0
          %v1427 = vadd.f32 0.0, %v1426
          %v1428 = vpop.f32.mrf.mxu0
          %1429 = vdwg.mxu0
          %v1430 = vadd.f32 %v1286, %v1356
          %v1431 = vmul.f32 %v1430, 0.5
          %v1432 = vtanh.pop %v1431
          %v1433 = vmul.f32 %v1432, 0.5
          %v1434 = vadd.f32 %v1433, 0.5
          %v1435 = vadd.f32 %v1287, %v1358
          %v1436 = vmul.f32 %v1435, 0.5
          %v1437 = vtanh.pop %v1436
          %v1438 = vmul.f32 %v1437, 0.5
          %v1439 = vadd.f32 %v1438, 0.5
          %v1440 = vadd.f32 %v1427, %v616
          %v1441 = vmul.f32 %v1434, %v1440
          %v1442 = vadd.f32 %v1288, %v1441
          %v1443 = vtanh.pop %v1442
          %v1444 = vsub.f32 1.0, %v1439
          %v1445 = vmul.f32 %v1444, %v1443
          %v1446 = vmul.f32 %v1439, %v1284
          %v1447 = vadd.f32 %v1445, %v1446
          %s1448 = sadd.s32 %s618, 1
          %p1449 = scmp.lt.s32.totalorder %s1448, 8
          %s1450 = scalar_select %p1449, 1, 0
          %v1451 = vstv %s1450
          %vm1452 = vcmp.eq.s32.totalorder %v1451, 1
          %v1453 = vsel %vm1452, %v1447, %v1284
          %s1454 = scalar_lea.vmem [#allocation3], 48
          %v1455 = vld [vmem:[%s1454] sm:$0xff]
          %v1456 = vld [vmem:[%s1454 + $0x8] sm:$0xff]
          %v1457 = vld [vmem:[%s1454 + $0x10] sm:$0xff]
          %1458 = vmatprep.subr.mxu0 %v609
          %1459 = vmatpush1.msra.mxu0 %v608
          %1460 = vmatprep.subr.mxu0 %v606
          %1461 = vmatpush1.msra.mxu0 %v605
          %1462 = vmatprep.subr.mxu0 %v603
          %1463 = vmatpush1.msra.mxu0 %v602
          %1464 = vmatprep.subr.mxu0 %v600
          %1465 = vmatpush1.msra.mxu0 %v599
          %1466 = vmatprep.subr.mxu0 %v597
          %1467 = vmatpush1.msra.mxu0 %v596
          %1468 = vmatprep.subr.mxu0 %v594
          %1469 = vmatpush1.msra.mxu0 %v593
          %1470 = vmatprep.subr.mxu0 %v591
          %1471 = vmatpush1.msra.mxu0 %v590
          %1472 = vmatprep.subr.mxu0 %v588
          %1473 = vmatpush1.msra.mxu0 %v587
          %1474 = vmatprep.subr.mxu0 %v585
          %1475 = vmatpush1.msra.mxu0 %v584
          %1476 = vmatprep.subr.mxu0 %v582
          %1477 = vmatpush1.msra.mxu0 %v581
          %1478 = vmatprep.subr.mxu0 %v579
          %1479 = vmatpush1.msra.mxu0 %v578
          %1480 = vmatprep.subr.mxu0 %v576
          %1481 = vmatpush1.msra.mxu0 %v575
          %1482 = vmatprep.subr.mxu0 %v573
          %1483 = vmatpush1.msra.mxu0 %v572
          %1484 = vmatprep.subr.mxu0 %v570
          %1485 = vmatpush1.msra.mxu0 %v569
          %1486 = vmatprep.subr.mxu0 %v567
          %1487 = vmatpush1.msra.mxu0 %v566
          %1488 = vmatprep.subr.mxu0 %v564
          %1489 = vmatpush1.msra.mxu0 %v563
          %1490 = vmatprep.subr.mxu0 0.0
          %1491 = vmatpush2.msra.mxu0 0.0
          %1492 = vmatprep.subr.mxu0 0.0
          %1493 = vmatpush2.msra.mxu0 0.0
          %1494 = vmatprep.subr.mxu0 0.0
          %1495 = vmatpush2.msra.mxu0 0.0
          %1496 = vmatprep.subr.mxu0 0.0
          %1497 = vmatpush2.msra.mxu0 0.0
          %1498 = vmatprep.subr.mxu0 0.0
          %1499 = vmatpush2.msra.mxu0 0.0
          %1500 = vmatprep.subr.mxu0 0.0
          %1501 = vmatpush2.msra.mxu0 0.0
          %1502 = vmatprep.subr.mxu0 0.0
          %1503 = vmatpush2.msra.mxu0 0.0
          %1504 = vmatprep.subr.mxu0 0.0
          %1505 = vmatpush2.msra.mxu0 0.0
          %1506 = vmatprep.subr.mxu0 0.0
          %1507 = vmatpush2.msra.mxu0 0.0
          %1508 = vmatprep.subr.mxu0 0.0
          %1509 = vmatpush2.msra.mxu0 0.0
          %1510 = vmatprep.subr.mxu0 0.0
          %1511 = vmatpush2.msra.mxu0 0.0
          %1512 = vmatprep.subr.mxu0 0.0
          %1513 = vmatpush2.msra.mxu0 0.0
          %1514 = vmatprep.subr.mxu0 0.0
          %1515 = vmatpush2.msra.mxu0 0.0
          %1516 = vmatprep.subr.mxu0 0.0
          %1517 = vmatpush2.msra.mxu0 0.0
          %1518 = vmatprep.subr.mxu0 0.0
          %1519 = vmatpush2.msra.mxu0 0.0
          %1520 = vmatprep.subr.mxu0 0.0
          %1521 = vmatpush2.msra.mxu0 0.0
          %1522 = vmatprep.mubr.f32.mxu0 0.0
          %1523 = vmatmul.mubr.f32.gmra.mxu0 %v1453
          %v1524 = vpop.f32.mrf.mxu0
          %v1525 = vadd.f32 0.0, %v1524
          %v1526 = vpop.f32.mrf.mxu0
          %v1527 = vadd.f32 0.0, %v1526
          %1528 = vdwg.mxu0
          %1529 = vmatprep.subr.mxu0 0.0
          %1530 = vmatpush1.msra.mxu0 %v610
          %1531 = vmatprep.subr.mxu0 0.0
          %1532 = vmatpush1.msra.mxu0 %v607
          %1533 = vmatprep.subr.mxu0 0.0
          %1534 = vmatpush1.msra.mxu0 %v604
          %1535 = vmatprep.subr.mxu0 0.0
          %1536 = vmatpush1.msra.mxu0 %v601
          %1537 = vmatprep.subr.mxu0 0.0
          %1538 = vmatpush1.msra.mxu0 %v598
          %1539 = vmatprep.subr.mxu0 0.0
          %1540 = vmatpush1.msra.mxu0 %v595
          %1541 = vmatprep.subr.mxu0 0.0
          %1542 = vmatpush1.msra.mxu0 %v592
          %1543 = vmatprep.subr.mxu0 0.0
          %1544 = vmatpush1.msra.mxu0 %v589
          %1545 = vmatprep.subr.mxu0 0.0
          %1546 = vmatpush1.msra.mxu0 %v586
          %1547 = vmatprep.subr.mxu0 0.0
          %1548 = vmatpush1.msra.mxu0 %v583
          %1549 = vmatprep.subr.mxu0 0.0
          %1550 = vmatpush1.msra.mxu0 %v580
          %1551 = vmatprep.subr.mxu0 0.0
          %1552 = vmatpush1.msra.mxu0 %v577
          %1553 = vmatprep.subr.mxu0 0.0
          %1554 = vmatpush1.msra.mxu0 %v574
          %1555 = vmatprep.subr.mxu0 0.0
          %1556 = vmatpush1.msra.mxu0 %v571
          %1557 = vmatprep.subr.mxu0 0.0
          %1558 = vmatpush1.msra.mxu0 %v568
          %1559 = vmatprep.subr.mxu0 0.0
          %1560 = vmatpush1.msra.mxu0 %v565
          %1561 = vmatprep.subr.mxu0 0.0
          %1562 = vmatpush2.msra.mxu0 0.0
          %1563 = vmatprep.subr.mxu0 0.0
          %1564 = vmatpush2.msra.mxu0 0.0
          %1565 = vmatprep.subr.mxu0 0.0
          %1566 = vmatpush2.msra.mxu0 0.0
          %1567 = vmatprep.subr.mxu0 0.0
          %1568 = vmatpush2.msra.mxu0 0.0
          %1569 = vmatprep.subr.mxu0 0.0
          %1570 = vmatpush2.msra.mxu0 0.0
          %1571 = vmatprep.subr.mxu0 0.0
          %1572 = vmatpush2.msra.mxu0 0.0
          %1573 = vmatprep.subr.mxu0 0.0
          %1574 = vmatpush2.msra.mxu0 0.0
          %1575 = vmatprep.subr.mxu0 0.0
          %1576 = vmatpush2.msra.mxu0 0.0
          %1577 = vmatprep.subr.mxu0 0.0
          %1578 = vmatpush2.msra.mxu0 0.0
          %1579 = vmatprep.subr.mxu0 0.0
          %1580 = vmatpush2.msra.mxu0 0.0
          %1581 = vmatprep.subr.mxu0 0.0
          %1582 = vmatpush2.msra.mxu0 0.0
          %1583 = vmatprep.subr.mxu0 0.0
          %1584 = vmatpush2.msra.mxu0 0.0
          %1585 = vmatprep.subr.mxu0 0.0
          %1586 = vmatpush2.msra.mxu0 0.0
          %1587 = vmatprep.subr.mxu0 0.0
          %1588 = vmatpush2.msra.mxu0 0.0
          %1589 = vmatprep.subr.mxu0 0.0
          %1590 = vmatpush2.msra.mxu0 0.0
          %1591 = vmatprep.subr.mxu0 0.0
          %1592 = vmatpush2.msra.mxu0 0.0
          %1593 = vmatprep.mubr.f32.mxu0 0.0
          %1594 = vmatmul.mubr.f32.gmra.mxu0 %v1453
          %v1595 = vpop.f32.mrf.mxu0
          %v1596 = vadd.f32 0.0, %v1595
          %v1597 = vpop.f32.mrf.mxu0
          %1598 = vdwg.mxu0
          %v1599 = vadd.f32 %v1455, %v1525
          %v1600 = vmul.f32 %v1599, 0.5
          %v1601 = vtanh.pop %v1600
          %v1602 = vmul.f32 %v1601, 0.5
          %v1603 = vadd.f32 %v1602, 0.5
          %v1604 = vadd.f32 %v1456, %v1527
          %v1605 = vmul.f32 %v1604, 0.5
          %v1606 = vtanh.pop %v1605
          %v1607 = vmul.f32 %v1606, 0.5
          %v1608 = vadd.f32 %v1607, 0.5
          %v1609 = vadd.f32 %v1596, %v616
          %v1610 = vmul.f32 %v1603, %v1609
          %v1611 = vadd.f32 %v1457, %v1610
          %v1612 = vtanh.pop %v1611
          %v1613 = vsub.f32 1.0, %v1608
          %v1614 = vmul.f32 %v1613, %v1612
          %v1615 = vmul.f32 %v1608, %v1453
          %v1616 = vadd.f32 %v1614, %v1615
          %s1617 = sadd.s32 %s618, 2
          %p1618 = scmp.lt.s32.totalorder %s1617, 8
          %s1619 = scalar_select %p1618, 1, 0
          %v1620 = vstv %s1619
          %vm1621 = vcmp.eq.s32.totalorder %v1620, 1
          %v1622 = vsel %vm1621, %v1616, %v1453
          %1623 = vst [vmem:[#allocation2] sm:$0xff] %v1622
          %v1624 = vld [vmem:[#allocation2] sm:$0xff]
          %v1625 = vld [vmem:[#allocation10] sm:$0xff]
          %v1626 = vld [vmem:[#allocation10 + $0x8] sm:$0xff]
          %v1627 = vld [vmem:[#allocation10 + $0x10] sm:$0xff]
          %v1628 = vld [vmem:[#allocation10 + $0x18] sm:$0xff]
          %v1629 = vld [vmem:[#allocation10 + $0x20] sm:$0xff]
          %v1630 = vld [vmem:[#allocation10 + $0x28] sm:$0xff]
          %v1631 = vld [vmem:[#allocation10 + $0x30] sm:$0xff]
          %v1632 = vld [vmem:[#allocation10 + $0x38] sm:$0xff]
          %v1633 = vld [vmem:[#allocation10 + $0x40] sm:$0xff]
          %v1634 = vld [vmem:[#allocation10 + $0x48] sm:$0xff]
          %v1635 = vld [vmem:[#allocation10 + $0x50] sm:$0xff]
          %v1636 = vld [vmem:[#allocation10 + $0x58] sm:$0xff]
          %v1637 = vld [vmem:[#allocation10 + $0x60] sm:$0xff]
          %v1638 = vld [vmem:[#allocation10 + $0x68] sm:$0xff]
          %v1639 = vld [vmem:[#allocation10 + $0x70] sm:$0xff]
          %v1640 = vld [vmem:[#allocation10 + $0x78] sm:$0xff]
          %v1641 = vld [vmem:[%s6] sm:$0x1]
          %v1643 = vlaneseq
          %v1644 = vshrl.u32 %v1643, 7
          %v1645 = vsub.s32 0, %v1644
          %v1646 = vrot.slane %v1641, %v1645
          %1648 = vmatprep.subr.mxu0 0.0
          %1649 = vmatpush1.msra.mxu0 %v1640
          %1650 = vmatprep.subr.mxu0 0.0
          %1651 = vmatpush1.msra.mxu0 %v1639
          %1652 = vmatprep.subr.mxu0 0.0
          %1653 = vmatpush1.msra.mxu0 %v1638
          %1654 = vmatprep.subr.mxu0 0.0
          %1655 = vmatpush1.msra.mxu0 %v1637
          %1656 = vmatprep.subr.mxu0 0.0
          %1657 = vmatpush1.msra.mxu0 %v1636
          %1658 = vmatprep.subr.mxu0 0.0
          %1659 = vmatpush1.msra.mxu0 %v1635
          %1660 = vmatprep.subr.mxu0 0.0
          %1661 = vmatpush1.msra.mxu0 %v1634
          %1662 = vmatprep.subr.mxu0 0.0
          %1663 = vmatpush1.msra.mxu0 %v1633
          %1664 = vmatprep.subr.mxu0 0.0
          %1665 = vmatpush1.msra.mxu0 %v1632
          %1666 = vmatprep.subr.mxu0 0.0
          %1667 = vmatpush1.msra.mxu0 %v1631
          %1668 = vmatprep.subr.mxu0 0.0
          %1669 = vmatpush1.msra.mxu0 %v1630
          %1670 = vmatprep.subr.mxu0 0.0
          %1671 = vmatpush1.msra.mxu0 %v1629
          %1672 = vmatprep.subr.mxu0 0.0
          %1673 = vmatpush1.msra.mxu0 %v1628
          %1674 = vmatprep.subr.mxu0 0.0
          %1675 = vmatpush1.msra.mxu0 %v1627
          %1676 = vmatprep.subr.mxu0 0.0
          %1677 = vmatpush1.msra.mxu0 %v1626
          %1678 = vmatprep.subr.mxu0 0.0
          %1679 = vmatpush1.msra.mxu0 %v1625
          %1680 = vmatprep.subr.mxu0 0.0
          %1681 = vmatpush2.msra.mxu0 0.0
          %1682 = vmatprep.subr.mxu0 0.0
          %1683 = vmatpush2.msra.mxu0 0.0
          %1684 = vmatprep.subr.mxu0 0.0
          %1685 = vmatpush2.msra.mxu0 0.0
          %1686 = vmatprep.subr.mxu0 0.0
          %1687 = vmatpush2.msra.mxu0 0.0
          %1688 = vmatprep.subr.mxu0 0.0
          %1689 = vmatpush2.msra.mxu0 0.0
          %1690 = vmatprep.subr.mxu0 0.0
          %1691 = vmatpush2.msra.mxu0 0.0
          %1692 = vmatprep.subr.mxu0 0.0
          %1693 = vmatpush2.msra.mxu0 0.0
          %1694 = vmatprep.subr.mxu0 0.0
          %1695 = vmatpush2.msra.mxu0 0.0
          %1696 = vmatprep.subr.mxu0 0.0
          %1697 = vmatpush2.msra.mxu0 0.0
          %1698 = vmatprep.subr.mxu0 0.0
          %1699 = vmatpush2.msra.mxu0 0.0
          %1700 = vmatprep.subr.mxu0 0.0
          %1701 = vmatpush2.msra.mxu0 0.0
          %1702 = vmatprep.subr.mxu0 0.0
          %1703 = vmatpush2.msra.mxu0 0.0
          %1704 = vmatprep.subr.mxu0 0.0
          %1705 = vmatpush2.msra.mxu0 0.0
          %1706 = vmatprep.subr.mxu0 0.0
          %1707 = vmatpush2.msra.mxu0 0.0
          %1708 = vmatprep.subr.mxu0 0.0
          %1709 = vmatpush2.msra.mxu0 0.0
          %1710 = vmatprep.subr.mxu0 0.0
          %1711 = vmatpush2.msra.mxu0 0.0
          %1712 = vmatprep.mubr.f32.mxu0 0.0
          %1713 = vmatmul.mubr.f32.gmra.mxu0 %v1624
          %v1714 = vpop.f32.mrf.mxu0
          %v1715 = vadd.f32 %v1646, %v1714
          %v1716 = vpop.f32.mrf.mxu0
          %1717 = vdwg.mxu0
          %1718 = vst [vmem:[#allocation12] sm:$0xff] %v1715
        $region76: #{tpu_custom_call.1} parent=47 // pred_fallthru
          _
        // Predicated region
        $region77: #{tpu_custom_call.1} parent=47 // pred_check
          %p1719 = pneg %p208
        $region78: #{tpu_custom_call.1} parent=47 // pred_check_branch
          %1721 = sbr.rel (%p1719) target = $region80
        $region79: #{tpu_custom_call.1} parent=47 // pred_region
          %s1723 = ssub.s32 128, 128
          %1724 = vsyncadd [#allocation6], %s1723
          %s1725 = smul.addr %s28, 128
          %s1726 = scalar_lea.hbm %s7, %s1725
          %s1728 = sshll.u32 [#allocation12], 4
          %s1729 = int_to_ptr.vmem [resolvable:$true] %s1728
          %1731 = dma.vmem_to_hbm [thread:$0]  %s1729, 128, %s1726, [#allocation6]
        $region80: #{tpu_custom_call.1} parent=47 // pred_fallthru
          _
        // Predicated region
        $region81: #{tpu_custom_call.1} parent=47 // pred_check
          %p1732 = pneg %p208
        $region82: #{tpu_custom_call.1} parent=47 // pred_check_branch
          %1734 = sbr.rel (%p1732) target = $region84
        $region83: #{tpu_custom_call.1} parent=47 // pred_region
          %1735 = dma.done [#allocation6], 128
        $region84: #{tpu_custom_call.1} parent=47 // pred_fallthru
          _
      $region48: #{tpu_custom_call.1} parent=5 // pred_fallthru
        _
      %p1736 = scmp.le.s32.totalorder 2, %s19
      // Predicated region
      $region85: #{tpu_custom_call.1} parent=5 // pred_check
        %p1737 = pneg %p1736
      $region86: #{tpu_custom_call.1} parent=5 // pred_check_branch
        %1739 = sbr.rel (%p1737) target = $region88
      $region87: #{tpu_custom_call.1} parent=5 // pred_region
        %s1740 = ssub.s32 %s19, 2
      $region88: #{tpu_custom_call.1} parent=5 // pred_fallthru
        _
    $region6: #{tpu_custom_call.1} parent=1 // loop_footer
      %s23 = sadd.s32 1, %s19
    $region7: #{tpu_custom_call.1} parent=1 // loop_footer_branch
      %18 = sbr.rel target = $region3
    $region8: #{tpu_custom_call.1} parent=1 // loop_exit
      _
    %1741 = vsyncpa [#allocation5], 1
    %s1742 = scalar_lea.sflag [#allocation5], 1
    %1743 = vsyncpa %s1742, 1
    %1744 = vsyncpa [#allocation8], 1
    %1745 = vsyncpa [#allocation11], 1
    %1746 = vsyncpa [#allocation6], 1
    %s1747 = scalar_lea.sflag [#allocation6], 1
    %1748 = vsyncpa %s1747, 1

</llo_original>
